<compile_context>
chip_gen: v7x
topology: tpu7x:2x2x1
jax: 0.10.0
libtpu: 0.0.40
codegen_flags: <defaults>
</compile_context>

<pallas_src>
import functools

import jax
import jax.numpy as jnp
from jax import lax
from jax.experimental import pallas as pl
from jax.experimental.pallas import tpu as pltpu


def _round_up(x, m):
    return (x + m - 1) // m * m


# ----------------------------- Pallas kernel ------------------------------ #
def _nonlocal_attn_kernel(x_ref, wq_ref, bq_ref, wkv_ref, bkv_ref, wo_ref,
                          bo_ref, gamma_ref, o_ref,
                          pool_scr, hrow_scr, kT_scr, vp_scr,
                          *, tq, hp, wp, w_len, dqp, dv, compute_dtype):
    qt = pl.program_id(1)
    cd = compute_dtype

    # ---- once per image: project K|V chunk-wise, 2x2 max-pool, cache ------ #
    @pl.when(qt == 0)
    def _project_and_pool():
        # One h-row-pair (2*W rows of x) per chunk: live values stay small
        # (~2W x dkv), each pooled row is written exactly once.
        for ho in range(hp):
            r0 = 2 * ho * w_len                                   # static
            xc = x_ref[0, r0:r0 + 2 * w_len, :]                   # (2W, C) f32
            kv = jnp.dot(xc.astype(cd), wkv_ref[...],
                         preferred_element_type=jnp.float32) + bkv_ref[...]
            # h-pool: rows [0:W) are h=2ho, rows [W:2W) are h=2ho+1.
            hrow_scr[...] = jnp.maximum(kv[0:w_len, :], kv[w_len:2 * w_len, :])
            # w-pool: adjacent column pairs via stride-2 sublane reads.
            wa = hrow_scr[pl.ds(0, wp, stride=2), :]
            wb = hrow_scr[pl.ds(1, wp, stride=2), :]
            pool_scr[ho * wp:(ho + 1) * wp, :] = jnp.maximum(wa, wb)

        # Cast pooled K/V to the matmul dtype ONCE per image.  K is stored
        # transposed (dqp, S4) so every per-tile score matmul contracts on the
        # sublane axis; the transpose itself is done with a tiny identity
        # matmul on the MXU (one-off, avoids relying on a standalone vector
        # transpose lowering).
        kp = pool_scr[:, 0:dqp]                                   # (S4, dqp) f32
        row = lax.broadcasted_iota(jnp.int32, (dqp, dqp), 0)
        col = lax.broadcasted_iota(jnp.int32, (dqp, dqp), 1)
        eye = (row == col).astype(jnp.float32)
        kT = lax.dot_general(eye, kp, (((1,), (1,)), ((), ())),
                             preferred_element_type=jnp.float32)  # (dqp, S4)
        kT_scr[...] = kT.astype(cd)
        vp_scr[...] = pool_scr[:, dqp:dqp + dv].astype(cd)        # (S4, dv)

    # -------------------------- per query tile ----------------------------- #
    q_start = pl.multiple_of(qt * tq, tq)
    xq = x_ref[0, pl.ds(q_start, tq), :]                          # (tq, C) f32
    q_t = jnp.dot(xq.astype(cd), wq_ref[...],
                  preferred_element_type=jnp.float32) + bq_ref[...]   # (tq, dqp)

    # Scores against the pre-transposed pooled keys (natural MXU orientation).
    scores = jnp.dot(q_t.astype(cd), kT_scr[...],
                     preferred_element_type=jnp.float32)          # (tq, S4)

    # Numerically stable softmax; normalization deferred past PV (all f32).
    m = jnp.max(scores, axis=-1, keepdims=True)
    e = jnp.exp(scores - m)
    denom = jnp.sum(e, axis=-1, keepdims=True)                    # (tq, 1)
    attn_un = jnp.dot(e.astype(cd), vp_scr[...],
                      preferred_element_type=jnp.float32)         # (tq, dv)
    # Exact reciprocal (approx rcp caused the previous ~1e-2 mismatch).
    attn = attn_un * (1.0 / denom)

    out_t = jnp.dot(attn.astype(cd), wo_ref[...],
                    preferred_element_type=jnp.float32) + bo_ref[...]  # (tq, C)

    # norm_func / activ_func are Identity in the module's default config.
    o_ref[0] = xq + gamma_ref[0] * out_t


# ------------------------------- wrapper ----------------------------------- #
def nonlocal_attention_2d(x, params, gamma, *, q_tile=None,
                          matmul_dtype=jnp.float32):
    """x: (N, H, W, C) float32 -> (N, H, W, C) float32.

    NHWC is the kernel-native layout; use nonlocal_attention_2d_nchw for
    drop-in parity with the PyTorch module.  matmul_dtype=jnp.bfloat16 is
    worthwhile on v5e/v6e/v7x (bf16-native MXU); softmax stats, normalization
    and the residual stay f32 regardless.
    """
    N, H, W, C = x.shape
    assert H % 2 == 0 and W % 2 == 0, "2x2/stride-2 max-pool needs even H, W"
    HW = H * W
    Hp, Wp = H // 2, W // 2
    S4 = Hp * Wp

    wq, bq, wk, bk, wv, bv, wo, bo = params
    dq = wq.shape[1]
    dv = wv.shape[1]
    dqp = _round_up(max(dq, 8), 8)                     # padded q/k head width
    dkv_pad = _round_up(max(dqp + dv, 128), 128)       # lane-dense fused K|V width

    # Fused, zero-padded K|V weight / bias (trace-time, tiny).  Padded K
    # columns project to exactly 0 (zero weight + zero bias), so they pool to
    # 0 and contribute nothing to the scores.
    wkv = jnp.zeros((C, dkv_pad), jnp.float32)
    wkv = wkv.at[:, 0:dq].set(wk).at[:, dqp:dqp + dv].set(wv)
    bkv = jnp.zeros((1, dkv_pad), jnp.float32)
    bkv = bkv.at[:, 0:dq].set(bk).at[:, dqp:dqp + dv].set(bv)
    wq_p = jnp.zeros((C, dqp), jnp.float32).at[:, 0:dq].set(wq)
    bq_p = jnp.zeros((1, dqp), jnp.float32).at[:, 0:dq].set(bq)

    # Query-tile size: bigger tiles amortize per-step overhead on 128 MiB
    # parts (v5e/v6e); keep <=512 on v7x (64 MiB VMEM).
    if q_tile is None:
        try:
            big_vmem = pltpu.get_tpu_info().vmem_capacity_bytes >= (96 << 20)
        except Exception:
            big_vmem = False
        target = min(HW, 1024 if big_vmem else 512)
        q_tile = HW
        cand = (target // 8) * 8
        while cand >= 8:
            if HW % cand == 0:
                q_tile = cand
                break
            cand -= 8
    assert HW % q_tile == 0
    n_qt = HW // q_tile

    xf = x.reshape(N, HW, C)                           # free reshape
    gamma_arr = jnp.asarray(gamma, jnp.float32).reshape(1)

    cd_bytes = jnp.dtype(matmul_dtype).itemsize
    # VMEM budget from the actual buffers (x/out/weights double-buffered by the
    # pipeline) plus generous margin; floor at the 32 MiB scoped default.
    vmem_need = (
        2 * HW * C * 4 + 2 * q_tile * C * 4
        + 2 * (C * (dqp + dkv_pad) + dv * C) * cd_bytes
        + 2 * (dqp + dkv_pad + C) * 4
        + S4 * dkv_pad * 4 + W * dkv_pad * 4
        + (dqp * S4 + S4 * dv) * cd_bytes
    )
    vmem_limit = int(min(max(2 * vmem_need, 32 << 20), 100 << 20))

    kernel = functools.partial(
        _nonlocal_attn_kernel, tq=q_tile, hp=Hp, wp=Wp, w_len=W,
        dqp=dqp, dv=dv, compute_dtype=matmul_dtype)

    out = pl.pallas_call(
        kernel,
        out_shape=jax.ShapeDtypeStruct((N, HW, C), jnp.float32),
        grid=(N, n_qt),
        in_specs=[
            pl.BlockSpec((1, HW, C), lambda n, t: (n, 0, 0)),   # x resident / image
            pl.BlockSpec((C, dqp), lambda n, t: (0, 0)),        # Wq (padded)
            pl.BlockSpec((1, dqp), lambda n, t: (0, 0)),        # bq (padded)
            pl.BlockSpec((C, dkv_pad), lambda n, t: (0, 0)),    # fused Wk|Wv
            pl.BlockSpec((1, dkv_pad), lambda n, t: (0, 0)),    # fused bk|bv
            pl.BlockSpec((dv, C), lambda n, t: (0, 0)),         # Wout
            pl.BlockSpec((1, C), lambda n, t: (0, 0)),          # bout
            pl.BlockSpec(memory_space=pltpu.MemorySpace.SMEM),  # gamma scalar
        ],
        # Note: for production C (>=128, multiple of 128) the output block is
        # lane-dense; small C (as in this test) falls back to masked stores.
        out_specs=pl.BlockSpec((1, q_tile, C), lambda n, t: (n, t, 0)),
        scratch_shapes=[
            pltpu.VMEM((S4, dkv_pad), jnp.float32),    # pooled K|V (f32, per image)
            pltpu.VMEM((W, dkv_pad), jnp.float32),     # per-chunk h-pooled rows
            pltpu.VMEM((dqp, S4), matmul_dtype),       # pooled K, transposed, cd
            pltpu.VMEM((S4, dv), matmul_dtype),        # pooled V, cd
        ],
        compiler_params=pltpu.CompilerParams(
            # N is 'parallel' (megacore-shards across TCs when N >= 2); the
            # query-tile axis carries per-image scratch state -> must stay the
            # innermost 'arbitrary' axis.
            dimension_semantics=("parallel", "arbitrary"),
            vmem_limit_bytes=vmem_limit),
    )(xf, wq_p.astype(matmul_dtype), bq_p, wkv.astype(matmul_dtype), bkv,
      wo.astype(matmul_dtype), bo, gamma_arr)

    return out.reshape(N, H, W, C)                     # free reshape


def nonlocal_attention_2d_nchw(x_nchw, params, gamma, **kwargs):
    """Drop-in NCHW compatibility shim (each transpose is one HBM pass; keep
    the surrounding model NHWC and call nonlocal_attention_2d directly to
    avoid it)."""
    out = nonlocal_attention_2d(jnp.transpose(x_nchw, (0, 2, 3, 1)),
                                params, gamma, **kwargs)
    return jnp.transpose(out, (0, 3, 1, 2))


# --------------------------- pure-JAX reference ----------------------------- #
def _maxpool2x2_nhwc(t):
    N, H, W, D = t.shape
    return jnp.max(t.reshape(N, H // 2, 2, W // 2, 2, D), axis=(2, 4))


def reference_nhwc(x, params, gamma):
    wq, bq, wk, bk, wv, bv, wo, bo = params
    N, H, W, C = x.shape
    xf = x.reshape(N, H * W, C)
    q = xf @ wq + bq
    k = _maxpool2x2_nhwc((xf @ wk + bk).reshape(N, H, W, -1))
    k = k.reshape(N, -1, k.shape[-1])
    scores = jnp.einsum('nqd,nsd->nqs', q, k)
    probs = jax.nn.softmax(scores, axis=-1)
    v = _maxpool2x2_nhwc((xf @ wv + bv).reshape(N, H, W, -1))
    v = v.reshape(N, -1, wv.shape[1])
    attn = jnp.einsum('nqs,nsd->nqd', probs, v)
    out = (attn @ wo + bo).reshape(N, H, W, C)
    return x + gamma * out


def reference_nchw(x_nchw, params, gamma):
    out = reference_nhwc(jnp.transpose(x_nchw, (0, 2, 3, 1)), params, gamma)
    return jnp.transpose(out, (0, 3, 1, 2))


# ------------------------------ param init ---------------------------------- #
def _xavier_uniform(key, fan_in, fan_out):
    bound = (6.0 / (fan_in + fan_out)) ** 0.5
    # stored as (in, out) == torch weight (out, in) transposed
    return jax.random.uniform(key, (fan_in, fan_out), jnp.float32, -bound, bound)


def init_params(key, in_channels, attn_ratio=8, value_ratio=2):
    dq = in_channels // attn_ratio
    dv = in_channels // value_ratio
    k1, k2, k3, k4 = jax.random.split(key, 4)
    wq = _xavier_uniform(k1, in_channels, dq)
    wk = _xavier_uniform(k2, in_channels, dq)
    wv = _xavier_uniform(k3, in_channels, dv)
    wo = _xavier_uniform(k4, dv, in_channels)
    bq = jnp.zeros((1, dq), jnp.float32)
    bk = jnp.zeros((1, dq), jnp.float32)
    bv = jnp.zeros((1, dv), jnp.float32)
    bo = jnp.zeros((1, in_channels), jnp.float32)
    return (wq, bq, wk, bk, wv, bv, wo, bo)


# --------------------------------- main -------------------------------------- #
if __name__ == "__main__":
    N, C, H, W = 2, 32, 16, 16
    key = jax.random.PRNGKey(0)
    kx, kp = jax.random.split(key)

    # Module-native NCHW input (the shim transposes to the kernel's NHWC).
    x_nchw = jax.random.normal(kx, (N, C, H, W), jnp.float32)
    params = init_params(kp, C)
    # learn_gamma=True initializes gamma=0.0 (output == input); use the
    # learn_gamma=False value gamma=1.0 so the attention path is exercised.
    gamma = 1.0

    # q_tile=128 -> grid (2, 2): exercises both the qt==0 project/pool path and
    # the scratch-reusing later query tiles.
    out = jax.block_until_ready(
        nonlocal_attention_2d_nchw(x_nchw, params, gamma, q_tile=128))
    ref = jax.block_until_ready(reference_nchw(x_nchw, params, gamma))

    assert out.shape == (N, C, H, W)
    max_err = float(jnp.max(jnp.abs(out - ref)))
    if max_err > 5e-3:
        raise AssertionError(f"Pallas kernel mismatch vs reference, max_err={max_err}")
    print("KERNEL_OK")
</pallas_src>

<mosaic_0001>
module attributes {stable_mosaic.version = 11 : i64} {
  func.func @_nonlocal_attn_kernel(%arg0: i32, %arg1: i32, %arg2: memref<1x256x32xf32, #tpu.memory_space<vmem>>, %arg3: memref<32x8xf32, #tpu.memory_space<vmem>>, %arg4: memref<1x8xf32, #tpu.memory_space<vmem>>, %arg5: memref<32x128xf32, #tpu.memory_space<vmem>>, %arg6: memref<1x128xf32, #tpu.memory_space<vmem>>, %arg7: memref<16x32xf32, #tpu.memory_space<vmem>>, %arg8: memref<1x32xf32, #tpu.memory_space<vmem>>, %arg9: memref<1xf32, #tpu.memory_space<smem>>, %arg10: memref<1x128x32xf32, #tpu.memory_space<vmem>>, %arg11: memref<64x128xf32, #tpu.memory_space<vmem>>, %arg12: memref<16x128xf32, #tpu.memory_space<vmem>>, %arg13: memref<8x64xf32, #tpu.memory_space<vmem>>, %arg14: memref<64x16xf32, #tpu.memory_space<vmem>>) attributes {dimension_semantics = [#tpu.dimension_semantics<parallel>, #tpu.dimension_semantics<arbitrary>], iteration_bounds = array<i64: 2, 2>, scalar_prefetch = 0 : i64, scratch_operands = 4 : i64, tpu.core_type = #tpu.core_type<tc>, window_params = [{transform_indices = @transform_0, window_bounds = array<i64: 1, 256, 32>}, {pipeline_mode = #tpu.pipeline_mode<synchronous>, transform_indices = @transform_1, window_bounds = array<i64: 32, 8>}, {pipeline_mode = #tpu.pipeline_mode<synchronous>, transform_indices = @transform_2, window_bounds = array<i64: 1, 8>}, {pipeline_mode = #tpu.pipeline_mode<synchronous>, transform_indices = @transform_3, window_bounds = array<i64: 32, 128>}, {pipeline_mode = #tpu.pipeline_mode<synchronous>, transform_indices = @transform_4, window_bounds = array<i64: 1, 128>}, {pipeline_mode = #tpu.pipeline_mode<synchronous>, transform_indices = @transform_5, window_bounds = array<i64: 16, 32>}, {pipeline_mode = #tpu.pipeline_mode<synchronous>, transform_indices = @transform_6, window_bounds = array<i64: 1, 32>}, {transform_indices = @transform_7, window_bounds = array<i64: 1>}, {transform_indices = @transform_8, window_bounds = array<i64: 1, 128, 32>}]} {
    %c0_i32 = arith.constant 0 : i32
    %0 = arith.cmpi eq, %arg1, %c0_i32 : i32
    %1 = arith.extui %0 : i1 to i32
    %c0_i32_0 = arith.constant 0 : i32
    %2 = arith.cmpi ne, %1, %c0_i32_0 : i32
    scf.if %2 {
      %c0_24 = arith.constant 0 : index
      %c0_25 = arith.constant 0 : index
      %c0_26 = arith.constant 0 : index
      %40 = vector.load %arg2[%c0_24, %c0_25, %c0_26] : memref<1x256x32xf32, #tpu.memory_space<vmem>>, vector<1x32x32xf32>
      %41 = vector.shape_cast %40 : vector<1x32x32xf32> to vector<32x32xf32>
      %c0_27 = arith.constant 0 : index
      %c0_28 = arith.constant 0 : index
      %42 = vector.load %arg5[%c0_27, %c0_28] : memref<32x128xf32, #tpu.memory_space<vmem>>, vector<32x128xf32>
      %cst_29 = arith.constant dense<0.000000e+00> : vector<32x128xf32>
      %43 = tpu.matmul %41, %42, %cst_29 {dimension_numbers = #tpu.dot_dimension_numbers<[1], [0], [0], [1], [0, 0, 1, 1], [], []>} : vector<32x32xf32>, vector<32x128xf32>, vector<32x128xf32> -> vector<32x128xf32>
      %c0_30 = arith.constant 0 : index
      %c0_31 = arith.constant 0 : index
      %44 = vector.load %arg6[%c0_30, %c0_31] : memref<1x128xf32, #tpu.memory_space<vmem>>, vector<1x128xf32>
      %45 = vector.broadcast %44 : vector<1x128xf32> to vector<32x128xf32>
      %46 = arith.addf %43, %45 : vector<32x128xf32>
      %47 = vector.extract_strided_slice %46 {offsets = [0, 0], sizes = [16, 128], strides = [1, 1]} : vector<32x128xf32> to vector<16x128xf32>
      %48 = vector.extract_strided_slice %46 {offsets = [16, 0], sizes = [16, 128], strides = [1, 1]} : vector<32x128xf32> to vector<16x128xf32>
      %49 = arith.maximumf %47, %48 : vector<16x128xf32>
      %c0_32 = arith.constant 0 : index
      %c0_33 = arith.constant 0 : index
      %50 = vector.load %arg12[%c0_32, %c0_33] : memref<16x128xf32, #tpu.memory_space<vmem>>, vector<16x128xf32>
      tpu.vector_store %arg12[%c0_32, %c0_33], %49 {strides = array<i32>} : memref<16x128xf32, #tpu.memory_space<vmem>>, vector<16x128xf32>,
      %c0_34 = arith.constant 0 : index
      %c0_35 = arith.constant 0 : index
      %51 = tpu.strided_load %arg12[%c0_34, %c0_35] {strides = array<i32: 2, 1>} : memref<16x128xf32, #tpu.memory_space<vmem>>, vector<8x128xf32>
      %c1 = arith.constant 1 : index
      %c0_36 = arith.constant 0 : index
      %52 = tpu.strided_load %arg12[%c1, %c0_36] {strides = array<i32: 2, 1>} : memref<16x128xf32, #tpu.memory_space<vmem>>, vector<8x128xf32>
      %53 = arith.maximumf %51, %52 : vector<8x128xf32>
      %c0_37 = arith.constant 0 : index
      %c0_38 = arith.constant 0 : index
      %54 = vector.load %arg11[%c0_37, %c0_38] : memref<64x128xf32, #tpu.memory_space<vmem>>, vector<8x128xf32>
      tpu.vector_store %arg11[%c0_37, %c0_38], %53 {strides = array<i32>} : memref<64x128xf32, #tpu.memory_space<vmem>>, vector<8x128xf32>,
      %c0_39 = arith.constant 0 : index
      %c32 = arith.constant 32 : index
      %c0_40 = arith.constant 0 : index
      %55 = vector.load %arg2[%c0_39, %c32, %c0_40] : memref<1x256x32xf32, #tpu.memory_space<vmem>>, vector<1x32x32xf32>
      %56 = vector.shape_cast %55 : vector<1x32x32xf32> to vector<32x32xf32>
      %c0_41 = arith.constant 0 : index
      %c0_42 = arith.constant 0 : index
      %57 = vector.load %arg5[%c0_41, %c0_42] : memref<32x128xf32, #tpu.memory_space<vmem>>, vector<32x128xf32>
      %cst_43 = arith.constant dense<0.000000e+00> : vector<32x128xf32>
      %58 = tpu.matmul %56, %57, %cst_43 {dimension_numbers = #tpu.dot_dimension_numbers<[1], [0], [0], [1], [0, 0, 1, 1], [], []>} : vector<32x32xf32>, vector<32x128xf32>, vector<32x128xf32> -> vector<32x128xf32>
      %c0_44 = arith.constant 0 : index
      %c0_45 = arith.constant 0 : index
      %59 = vector.load %arg6[%c0_44, %c0_45] : memref<1x128xf32, #tpu.memory_space<vmem>>, vector<1x128xf32>
      %60 = vector.broadcast %59 : vector<1x128xf32> to vector<32x128xf32>
      %61 = arith.addf %58, %60 : vector<32x128xf32>
      %62 = vector.extract_strided_slice %61 {offsets = [0, 0], sizes = [16, 128], strides = [1, 1]} : vector<32x128xf32> to vector<16x128xf32>
      %63 = vector.extract_strided_slice %61 {offsets = [16, 0], sizes = [16, 128], strides = [1, 1]} : vector<32x128xf32> to vector<16x128xf32>
      %64 = arith.maximumf %62, %63 : vector<16x128xf32>
      %c0_46 = arith.constant 0 : index
      %c0_47 = arith.constant 0 : index
      %65 = vector.load %arg12[%c0_46, %c0_47] : memref<16x128xf32, #tpu.memory_space<vmem>>, vector<16x128xf32>
      tpu.vector_store %arg12[%c0_46, %c0_47], %64 {strides = array<i32>} : memref<16x128xf32, #tpu.memory_space<vmem>>, vector<16x128xf32>,
      %c0_48 = arith.constant 0 : index
      %c0_49 = arith.constant 0 : index
      %66 = tpu.strided_load %arg12[%c0_48, %c0_49] {strides = array<i32: 2, 1>} : memref<16x128xf32, #tpu.memory_space<vmem>>, vector<8x128xf32>
      %c1_50 = arith.constant 1 : index
      %c0_51 = arith.constant 0 : index
      %67 = tpu.strided_load %arg12[%c1_50, %c0_51] {strides = array<i32: 2, 1>} : memref<16x128xf32, #tpu.memory_space<vmem>>, vector<8x128xf32>
      %68 = arith.maximumf %66, %67 : vector<8x128xf32>
      %c8 = arith.constant 8 : index
      %c0_52 = arith.constant 0 : index
      %69 = vector.load %arg11[%c8, %c0_52] : memref<64x128xf32, #tpu.memory_space<vmem>>, vector<8x128xf32>
      tpu.vector_store %arg11[%c8, %c0_52], %68 {strides = array<i32>} : memref<64x128xf32, #tpu.memory_space<vmem>>, vector<8x128xf32>,
      %c0_53 = arith.constant 0 : index
      %c64 = arith.constant 64 : index
      %c0_54 = arith.constant 0 : index
      %70 = vector.load %arg2[%c0_53, %c64, %c0_54] : memref<1x256x32xf32, #tpu.memory_space<vmem>>, vector<1x32x32xf32>
      %71 = vector.shape_cast %70 : vector<1x32x32xf32> to vector<32x32xf32>
      %c0_55 = arith.constant 0 : index
      %c0_56 = arith.constant 0 : index
      %72 = vector.load %arg5[%c0_55, %c0_56] : memref<32x128xf32, #tpu.memory_space<vmem>>, vector<32x128xf32>
      %cst_57 = arith.constant dense<0.000000e+00> : vector<32x128xf32>
      %73 = tpu.matmul %71, %72, %cst_57 {dimension_numbers = #tpu.dot_dimension_numbers<[1], [0], [0], [1], [0, 0, 1, 1], [], []>} : vector<32x32xf32>, vector<32x128xf32>, vector<32x128xf32> -> vector<32x128xf32>
      %c0_58 = arith.constant 0 : index
      %c0_59 = arith.constant 0 : index
      %74 = vector.load %arg6[%c0_58, %c0_59] : memref<1x128xf32, #tpu.memory_space<vmem>>, vector<1x128xf32>
      %75 = vector.broadcast %74 : vector<1x128xf32> to vector<32x128xf32>
      %76 = arith.addf %73, %75 : vector<32x128xf32>
      %77 = vector.extract_strided_slice %76 {offsets = [0, 0], sizes = [16, 128], strides = [1, 1]} : vector<32x128xf32> to vector<16x128xf32>
      %78 = vector.extract_strided_slice %76 {offsets = [16, 0], sizes = [16, 128], strides = [1, 1]} : vector<32x128xf32> to vector<16x128xf32>
      %79 = arith.maximumf %77, %78 : vector<16x128xf32>
      %c0_60 = arith.constant 0 : index
      %c0_61 = arith.constant 0 : index
      %80 = vector.load %arg12[%c0_60, %c0_61] : memref<16x128xf32, #tpu.memory_space<vmem>>, vector<16x128xf32>
      tpu.vector_store %arg12[%c0_60, %c0_61], %79 {strides = array<i32>} : memref<16x128xf32, #tpu.memory_space<vmem>>, vector<16x128xf32>,
      %c0_62 = arith.constant 0 : index
      %c0_63 = arith.constant 0 : index
      %81 = tpu.strided_load %arg12[%c0_62, %c0_63] {strides = array<i32: 2, 1>} : memref<16x128xf32, #tpu.memory_space<vmem>>, vector<8x128xf32>
      %c1_64 = arith.constant 1 : index
      %c0_65 = arith.constant 0 : index
      %82 = tpu.strided_load %arg12[%c1_64, %c0_65] {strides = array<i32: 2, 1>} : memref<16x128xf32, #tpu.memory_space<vmem>>, vector<8x128xf32>
      %83 = arith.maximumf %81, %82 : vector<8x128xf32>
      %c16 = arith.constant 16 : index
      %c0_66 = arith.constant 0 : index
      %84 = vector.load %arg11[%c16, %c0_66] : memref<64x128xf32, #tpu.memory_space<vmem>>, vector<8x128xf32>
      tpu.vector_store %arg11[%c16, %c0_66], %83 {strides = array<i32>} : memref<64x128xf32, #tpu.memory_space<vmem>>, vector<8x128xf32>,
      %c0_67 = arith.constant 0 : index
      %c96 = arith.constant 96 : index
      %c0_68 = arith.constant 0 : index
      %85 = vector.load %arg2[%c0_67, %c96, %c0_68] : memref<1x256x32xf32, #tpu.memory_space<vmem>>, vector<1x32x32xf32>
      %86 = vector.shape_cast %85 : vector<1x32x32xf32> to vector<32x32xf32>
      %c0_69 = arith.constant 0 : index
      %c0_70 = arith.constant 0 : index
      %87 = vector.load %arg5[%c0_69, %c0_70] : memref<32x128xf32, #tpu.memory_space<vmem>>, vector<32x128xf32>
      %cst_71 = arith.constant dense<0.000000e+00> : vector<32x128xf32>
      %88 = tpu.matmul %86, %87, %cst_71 {dimension_numbers = #tpu.dot_dimension_numbers<[1], [0], [0], [1], [0, 0, 1, 1], [], []>} : vector<32x32xf32>, vector<32x128xf32>, vector<32x128xf32> -> vector<32x128xf32>
      %c0_72 = arith.constant 0 : index
      %c0_73 = arith.constant 0 : index
      %89 = vector.load %arg6[%c0_72, %c0_73] : memref<1x128xf32, #tpu.memory_space<vmem>>, vector<1x128xf32>
      %90 = vector.broadcast %89 : vector<1x128xf32> to vector<32x128xf32>
      %91 = arith.addf %88, %90 : vector<32x128xf32>
      %92 = vector.extract_strided_slice %91 {offsets = [0, 0], sizes = [16, 128], strides = [1, 1]} : vector<32x128xf32> to vector<16x128xf32>
      %93 = vector.extract_strided_slice %91 {offsets = [16, 0], sizes = [16, 128], strides = [1, 1]} : vector<32x128xf32> to vector<16x128xf32>
      %94 = arith.maximumf %92, %93 : vector<16x128xf32>
      %c0_74 = arith.constant 0 : index
      %c0_75 = arith.constant 0 : index
      %95 = vector.load %arg12[%c0_74, %c0_75] : memref<16x128xf32, #tpu.memory_space<vmem>>, vector<16x128xf32>
      tpu.vector_store %arg12[%c0_74, %c0_75], %94 {strides = array<i32>} : memref<16x128xf32, #tpu.memory_space<vmem>>, vector<16x128xf32>,
      %c0_76 = arith.constant 0 : index
      %c0_77 = arith.constant 0 : index
      %96 = tpu.strided_load %arg12[%c0_76, %c0_77] {strides = array<i32: 2, 1>} : memref<16x128xf32, #tpu.memory_space<vmem>>, vector<8x128xf32>
      %c1_78 = arith.constant 1 : index
      %c0_79 = arith.constant 0 : index
      %97 = tpu.strided_load %arg12[%c1_78, %c0_79] {strides = array<i32: 2, 1>} : memref<16x128xf32, #tpu.memory_space<vmem>>, vector<8x128xf32>
      %98 = arith.maximumf %96, %97 : vector<8x128xf32>
      %c24 = arith.constant 24 : index
      %c0_80 = arith.constant 0 : index
      %99 = vector.load %arg11[%c24, %c0_80] : memref<64x128xf32, #tpu.memory_space<vmem>>, vector<8x128xf32>
      tpu.vector_store %arg11[%c24, %c0_80], %98 {strides = array<i32>} : memref<64x128xf32, #tpu.memory_space<vmem>>, vector<8x128xf32>,
      %c0_81 = arith.constant 0 : index
      %c128 = arith.constant 128 : index
      %c0_82 = arith.constant 0 : index
      %100 = vector.load %arg2[%c0_81, %c128, %c0_82] : memref<1x256x32xf32, #tpu.memory_space<vmem>>, vector<1x32x32xf32>
      %101 = vector.shape_cast %100 : vector<1x32x32xf32> to vector<32x32xf32>
      %c0_83 = arith.constant 0 : index
      %c0_84 = arith.constant 0 : index
      %102 = vector.load %arg5[%c0_83, %c0_84] : memref<32x128xf32, #tpu.memory_space<vmem>>, vector<32x128xf32>
      %cst_85 = arith.constant dense<0.000000e+00> : vector<32x128xf32>
      %103 = tpu.matmul %101, %102, %cst_85 {dimension_numbers = #tpu.dot_dimension_numbers<[1], [0], [0], [1], [0, 0, 1, 1], [], []>} : vector<32x32xf32>, vector<32x128xf32>, vector<32x128xf32> -> vector<32x128xf32>
      %c0_86 = arith.constant 0 : index
      %c0_87 = arith.constant 0 : index
      %104 = vector.load %arg6[%c0_86, %c0_87] : memref<1x128xf32, #tpu.memory_space<vmem>>, vector<1x128xf32>
      %105 = vector.broadcast %104 : vector<1x128xf32> to vector<32x128xf32>
      %106 = arith.addf %103, %105 : vector<32x128xf32>
      %107 = vector.extract_strided_slice %106 {offsets = [0, 0], sizes = [16, 128], strides = [1, 1]} : vector<32x128xf32> to vector<16x128xf32>
      %108 = vector.extract_strided_slice %106 {offsets = [16, 0], sizes = [16, 128], strides = [1, 1]} : vector<32x128xf32> to vector<16x128xf32>
      %109 = arith.maximumf %107, %108 : vector<16x128xf32>
      %c0_88 = arith.constant 0 : index
      %c0_89 = arith.constant 0 : index
      %110 = vector.load %arg12[%c0_88, %c0_89] : memref<16x128xf32, #tpu.memory_space<vmem>>, vector<16x128xf32>
      tpu.vector_store %arg12[%c0_88, %c0_89], %109 {strides = array<i32>} : memref<16x128xf32, #tpu.memory_space<vmem>>, vector<16x128xf32>,
      %c0_90 = arith.constant 0 : index
      %c0_91 = arith.constant 0 : index
      %111 = tpu.strided_load %arg12[%c0_90, %c0_91] {strides = array<i32: 2, 1>} : memref<16x128xf32, #tpu.memory_space<vmem>>, vector<8x128xf32>
      %c1_92 = arith.constant 1 : index
      %c0_93 = arith.constant 0 : index
      %112 = tpu.strided_load %arg12[%c1_92, %c0_93] {strides = array<i32: 2, 1>} : memref<16x128xf32, #tpu.memory_space<vmem>>, vector<8x128xf32>
      %113 = arith.maximumf %111, %112 : vector<8x128xf32>
      %c32_94 = arith.constant 32 : index
      %c0_95 = arith.constant 0 : index
      %114 = vector.load %arg11[%c32_94, %c0_95] : memref<64x128xf32, #tpu.memory_space<vmem>>, vector<8x128xf32>
      tpu.vector_store %arg11[%c32_94, %c0_95], %113 {strides = array<i32>} : memref<64x128xf32, #tpu.memory_space<vmem>>, vector<8x128xf32>,
      %c0_96 = arith.constant 0 : index
      %c160 = arith.constant 160 : index
      %c0_97 = arith.constant 0 : index
      %115 = vector.load %arg2[%c0_96, %c160, %c0_97] : memref<1x256x32xf32, #tpu.memory_space<vmem>>, vector<1x32x32xf32>
      %116 = vector.shape_cast %115 : vector<1x32x32xf32> to vector<32x32xf32>
      %c0_98 = arith.constant 0 : index
      %c0_99 = arith.constant 0 : index
      %117 = vector.load %arg5[%c0_98, %c0_99] : memref<32x128xf32, #tpu.memory_space<vmem>>, vector<32x128xf32>
      %cst_100 = arith.constant dense<0.000000e+00> : vector<32x128xf32>
      %118 = tpu.matmul %116, %117, %cst_100 {dimension_numbers = #tpu.dot_dimension_numbers<[1], [0], [0], [1], [0, 0, 1, 1], [], []>} : vector<32x32xf32>, vector<32x128xf32>, vector<32x128xf32> -> vector<32x128xf32>
      %c0_101 = arith.constant 0 : index
      %c0_102 = arith.constant 0 : index
      %119 = vector.load %arg6[%c0_101, %c0_102] : memref<1x128xf32, #tpu.memory_space<vmem>>, vector<1x128xf32>
      %120 = vector.broadcast %119 : vector<1x128xf32> to vector<32x128xf32>
      %121 = arith.addf %118, %120 : vector<32x128xf32>
      %122 = vector.extract_strided_slice %121 {offsets = [0, 0], sizes = [16, 128], strides = [1, 1]} : vector<32x128xf32> to vector<16x128xf32>
      %123 = vector.extract_strided_slice %121 {offsets = [16, 0], sizes = [16, 128], strides = [1, 1]} : vector<32x128xf32> to vector<16x128xf32>
      %124 = arith.maximumf %122, %123 : vector<16x128xf32>
      %c0_103 = arith.constant 0 : index
      %c0_104 = arith.constant 0 : index
      %125 = vector.load %arg12[%c0_103, %c0_104] : memref<16x128xf32, #tpu.memory_space<vmem>>, vector<16x128xf32>
      tpu.vector_store %arg12[%c0_103, %c0_104], %124 {strides = array<i32>} : memref<16x128xf32, #tpu.memory_space<vmem>>, vector<16x128xf32>,
      %c0_105 = arith.constant 0 : index
      %c0_106 = arith.constant 0 : index
      %126 = tpu.strided_load %arg12[%c0_105, %c0_106] {strides = array<i32: 2, 1>} : memref<16x128xf32, #tpu.memory_space<vmem>>, vector<8x128xf32>
      %c1_107 = arith.constant 1 : index
      %c0_108 = arith.constant 0 : index
      %127 = tpu.strided_load %arg12[%c1_107, %c0_108] {strides = array<i32: 2, 1>} : memref<16x128xf32, #tpu.memory_space<vmem>>, vector<8x128xf32>
      %128 = arith.maximumf %126, %127 : vector<8x128xf32>
      %c40 = arith.constant 40 : index
      %c0_109 = arith.constant 0 : index
      %129 = vector.load %arg11[%c40, %c0_109] : memref<64x128xf32, #tpu.memory_space<vmem>>, vector<8x128xf32>
      tpu.vector_store %arg11[%c40, %c0_109], %128 {strides = array<i32>} : memref<64x128xf32, #tpu.memory_space<vmem>>, vector<8x128xf32>,
      %c0_110 = arith.constant 0 : index
      %c192 = arith.constant 192 : index
      %c0_111 = arith.constant 0 : index
      %130 = vector.load %arg2[%c0_110, %c192, %c0_111] : memref<1x256x32xf32, #tpu.memory_space<vmem>>, vector<1x32x32xf32>
      %131 = vector.shape_cast %130 : vector<1x32x32xf32> to vector<32x32xf32>
      %c0_112 = arith.constant 0 : index
      %c0_113 = arith.constant 0 : index
      %132 = vector.load %arg5[%c0_112, %c0_113] : memref<32x128xf32, #tpu.memory_space<vmem>>, vector<32x128xf32>
      %cst_114 = arith.constant dense<0.000000e+00> : vector<32x128xf32>
      %133 = tpu.matmul %131, %132, %cst_114 {dimension_numbers = #tpu.dot_dimension_numbers<[1], [0], [0], [1], [0, 0, 1, 1], [], []>} : vector<32x32xf32>, vector<32x128xf32>, vector<32x128xf32> -> vector<32x128xf32>
      %c0_115 = arith.constant 0 : index
      %c0_116 = arith.constant 0 : index
      %134 = vector.load %arg6[%c0_115, %c0_116] : memref<1x128xf32, #tpu.memory_space<vmem>>, vector<1x128xf32>
      %135 = vector.broadcast %134 : vector<1x128xf32> to vector<32x128xf32>
      %136 = arith.addf %133, %135 : vector<32x128xf32>
      %137 = vector.extract_strided_slice %136 {offsets = [0, 0], sizes = [16, 128], strides = [1, 1]} : vector<32x128xf32> to vector<16x128xf32>
      %138 = vector.extract_strided_slice %136 {offsets = [16, 0], sizes = [16, 128], strides = [1, 1]} : vector<32x128xf32> to vector<16x128xf32>
      %139 = arith.maximumf %137, %138 : vector<16x128xf32>
      %c0_117 = arith.constant 0 : index
      %c0_118 = arith.constant 0 : index
      %140 = vector.load %arg12[%c0_117, %c0_118] : memref<16x128xf32, #tpu.memory_space<vmem>>, vector<16x128xf32>
      tpu.vector_store %arg12[%c0_117, %c0_118], %139 {strides = array<i32>} : memref<16x128xf32, #tpu.memory_space<vmem>>, vector<16x128xf32>,
      %c0_119 = arith.constant 0 : index
      %c0_120 = arith.constant 0 : index
      %141 = tpu.strided_load %arg12[%c0_119, %c0_120] {strides = array<i32: 2, 1>} : memref<16x128xf32, #tpu.memory_space<vmem>>, vector<8x128xf32>
      %c1_121 = arith.constant 1 : index
      %c0_122 = arith.constant 0 : index
      %142 = tpu.strided_load %arg12[%c1_121, %c0_122] {strides = array<i32: 2, 1>} : memref<16x128xf32, #tpu.memory_space<vmem>>, vector<8x128xf32>
      %143 = arith.maximumf %141, %142 : vector<8x128xf32>
      %c48 = arith.constant 48 : index
      %c0_123 = arith.constant 0 : index
      %144 = vector.load %arg11[%c48, %c0_123] : memref<64x128xf32, #tpu.memory_space<vmem>>, vector<8x128xf32>
      tpu.vector_store %arg11[%c48, %c0_123], %143 {strides = array<i32>} : memref<64x128xf32, #tpu.memory_space<vmem>>, vector<8x128xf32>,
      %c0_124 = arith.constant 0 : index
      %c224 = arith.constant 224 : index
      %c0_125 = arith.constant 0 : index
      %145 = vector.load %arg2[%c0_124, %c224, %c0_125] : memref<1x256x32xf32, #tpu.memory_space<vmem>>, vector<1x32x32xf32>
      %146 = vector.shape_cast %145 : vector<1x32x32xf32> to vector<32x32xf32>
      %c0_126 = arith.constant 0 : index
      %c0_127 = arith.constant 0 : index
      %147 = vector.load %arg5[%c0_126, %c0_127] : memref<32x128xf32, #tpu.memory_space<vmem>>, vector<32x128xf32>
      %cst_128 = arith.constant dense<0.000000e+00> : vector<32x128xf32>
      %148 = tpu.matmul %146, %147, %cst_128 {dimension_numbers = #tpu.dot_dimension_numbers<[1], [0], [0], [1], [0, 0, 1, 1], [], []>} : vector<32x32xf32>, vector<32x128xf32>, vector<32x128xf32> -> vector<32x128xf32>
      %c0_129 = arith.constant 0 : index
      %c0_130 = arith.constant 0 : index
      %149 = vector.load %arg6[%c0_129, %c0_130] : memref<1x128xf32, #tpu.memory_space<vmem>>, vector<1x128xf32>
      %150 = vector.broadcast %149 : vector<1x128xf32> to vector<32x128xf32>
      %151 = arith.addf %148, %150 : vector<32x128xf32>
      %152 = vector.extract_strided_slice %151 {offsets = [0, 0], sizes = [16, 128], strides = [1, 1]} : vector<32x128xf32> to vector<16x128xf32>
      %153 = vector.extract_strided_slice %151 {offsets = [16, 0], sizes = [16, 128], strides = [1, 1]} : vector<32x128xf32> to vector<16x128xf32>
      %154 = arith.maximumf %152, %153 : vector<16x128xf32>
      %c0_131 = arith.constant 0 : index
      %c0_132 = arith.constant 0 : index
      %155 = vector.load %arg12[%c0_131, %c0_132] : memref<16x128xf32, #tpu.memory_space<vmem>>, vector<16x128xf32>
      tpu.vector_store %arg12[%c0_131, %c0_132], %154 {strides = array<i32>} : memref<16x128xf32, #tpu.memory_space<vmem>>, vector<16x128xf32>,
      %c0_133 = arith.constant 0 : index
      %c0_134 = arith.constant 0 : index
      %156 = tpu.strided_load %arg12[%c0_133, %c0_134] {strides = array<i32: 2, 1>} : memref<16x128xf32, #tpu.memory_space<vmem>>, vector<8x128xf32>
      %c1_135 = arith.constant 1 : index
      %c0_136 = arith.constant 0 : index
      %157 = tpu.strided_load %arg12[%c1_135, %c0_136] {strides = array<i32: 2, 1>} : memref<16x128xf32, #tpu.memory_space<vmem>>, vector<8x128xf32>
      %158 = arith.maximumf %156, %157 : vector<8x128xf32>
      %c56 = arith.constant 56 : index
      %c0_137 = arith.constant 0 : index
      %159 = vector.load %arg11[%c56, %c0_137] : memref<64x128xf32, #tpu.memory_space<vmem>>, vector<8x128xf32>
      tpu.vector_store %arg11[%c56, %c0_137], %158 {strides = array<i32>} : memref<64x128xf32, #tpu.memory_space<vmem>>, vector<8x128xf32>,
      %c0_138 = arith.constant 0 : index
      %c0_139 = arith.constant 0 : index
      %160 = vector.load %arg11[%c0_138, %c0_139] : memref<64x128xf32, #tpu.memory_space<vmem>>, vector<64x8xf32>
      %161 = tpu.iota {dimensions = array<i32: 0>} : vector<8x8xi32>
      %162 = tpu.iota {dimensions = array<i32: 1>} : vector<8x8xi32>
      %163 = arith.cmpi eq, %161, %162 : vector<8x8xi32>
      %164 = arith.extui %163 : vector<8x8xi1> to vector<8x8xi32>
      %165 = arith.sitofp %164 : vector<8x8xi32> to vector<8x8xf32>
      %cst_140 = arith.constant dense<0.000000e+00> : vector<8x64xf32>
      %166 = tpu.matmul %165, %160, %cst_140 {dimension_numbers = #tpu.dot_dimension_numbers<[1], [1], [0], [0], [0, 0, 1, 0], [], []>} : vector<8x8xf32>, vector<64x8xf32>, vector<8x64xf32> -> vector<8x64xf32>
      %c0_141 = arith.constant 0 : index
      %c0_142 = arith.constant 0 : index
      %167 = vector.load %arg13[%c0_141, %c0_142] : memref<8x64xf32, #tpu.memory_space<vmem>>, vector<8x64xf32>
      tpu.vector_store %arg13[%c0_141, %c0_142], %166 {strides = array<i32>} : memref<8x64xf32, #tpu.memory_space<vmem>>, vector<8x64xf32>,
      %c0_143 = arith.constant 0 : index
      %c8_144 = arith.constant 8 : index
      %168 = vector.load %arg11[%c0_143, %c8_144] : memref<64x128xf32, #tpu.memory_space<vmem>>, vector<64x16xf32>
      %c0_145 = arith.constant 0 : index
      %c0_146 = arith.constant 0 : index
      %169 = vector.load %arg14[%c0_145, %c0_146] : memref<64x16xf32, #tpu.memory_space<vmem>>, vector<64x16xf32>
      tpu.vector_store %arg14[%c0_145, %c0_146], %168 {strides = array<i32>} : memref<64x16xf32, #tpu.memory_space<vmem>>, vector<64x16xf32>,
    } else {
    }
    %c128_i32 = arith.constant 128 : i32
    %3 = arith.muli %arg1, %c128_i32 : i32
    %4 = tpu.assume_multiple %3, 128 : i32
    %c0 = arith.constant 0 : index
    %5 = arith.index_cast %4 : i32 to index
    %c0_1 = arith.constant 0 : index
    %6 = vector.load %arg2[%c0, %5, %c0_1] : memref<1x256x32xf32, #tpu.memory_space<vmem>>, vector<1x128x32xf32>
    %7 = vector.shape_cast %6 : vector<1x128x32xf32> to vector<128x32xf32>
    %c0_2 = arith.constant 0 : index
    %c0_3 = arith.constant 0 : index
    %8 = vector.load %arg3[%c0_2, %c0_3] : memref<32x8xf32, #tpu.memory_space<vmem>>, vector<32x8xf32>
    %cst = arith.constant dense<0.000000e+00> : vector<128x8xf32>
    %9 = tpu.matmul %7, %8, %cst {dimension_numbers = #tpu.dot_dimension_numbers<[1], [0], [0], [1], [0, 0, 1, 1], [], []>} : vector<128x32xf32>, vector<32x8xf32>, vector<128x8xf32> -> vector<128x8xf32>
    %c0_4 = arith.constant 0 : index
    %c0_5 = arith.constant 0 : index
    %10 = vector.load %arg4[%c0_4, %c0_5] : memref<1x8xf32, #tpu.memory_space<vmem>>, vector<1x8xf32>
    %11 = vector.broadcast %10 : vector<1x8xf32> to vector<128x8xf32>
    %12 = arith.addf %9, %11 : vector<128x8xf32>
    %c0_6 = arith.constant 0 : index
    %c0_7 = arith.constant 0 : index
    %13 = vector.load %arg13[%c0_6, %c0_7] : memref<8x64xf32, #tpu.memory_space<vmem>>, vector<8x64xf32>
    %cst_8 = arith.constant dense<0.000000e+00> : vector<128x64xf32>
    %14 = tpu.matmul %12, %13, %cst_8 {dimension_numbers = #tpu.dot_dimension_numbers<[1], [0], [0], [1], [0, 0, 1, 1], [], []>} : vector<128x8xf32>, vector<8x64xf32>, vector<128x64xf32> -> vector<128x64xf32>
    %cst_9 = arith.constant dense<0xFF800000> : vector<128xf32>
    %15 = vector.multi_reduction <maximumf>, %14, %cst_9 [1] : vector<128x64xf32> to vector<128xf32>
    %16 = vector.shape_cast %15 : vector<128xf32> to vector<128x1xf32>
    %17 = vector.broadcast %16 : vector<128x1xf32> to vector<128x64xf32>
    %18 = arith.subf %14, %17 : vector<128x64xf32>
    %19 = math.exp %18 : vector<128x64xf32>
    %cst_10 = arith.constant dense<0.000000e+00> : vector<128xf32>
    %20 = vector.multi_reduction <add>, %19, %cst_10 [1] : vector<128x64xf32> to vector<128xf32>
    %21 = vector.shape_cast %20 : vector<128xf32> to vector<128x1xf32>
    %c0_11 = arith.constant 0 : index
    %c0_12 = arith.constant 0 : index
    %22 = vector.load %arg14[%c0_11, %c0_12] : memref<64x16xf32, #tpu.memory_space<vmem>>, vector<64x16xf32>
    %cst_13 = arith.constant dense<0.000000e+00> : vector<128x16xf32>
    %23 = tpu.matmul %19, %22, %cst_13 {dimension_numbers = #tpu.dot_dimension_numbers<[1], [0], [0], [1], [0, 0, 1, 1], [], []>} : vector<128x64xf32>, vector<64x16xf32>, vector<128x16xf32> -> vector<128x16xf32>
    %cst_14 = arith.constant 1.000000e+00 : f32
    %24 = vector.broadcast %cst_14 : f32 to vector<128x1xf32>
    %25 = arith.divf %24, %21 : vector<128x1xf32>
    %26 = vector.broadcast %25 : vector<128x1xf32> to vector<128x16xf32>
    %27 = arith.mulf %23, %26 : vector<128x16xf32>
    %c0_15 = arith.constant 0 : index
    %c0_16 = arith.constant 0 : index
    %28 = vector.load %arg7[%c0_15, %c0_16] : memref<16x32xf32, #tpu.memory_space<vmem>>, vector<16x32xf32>
    %cst_17 = arith.constant dense<0.000000e+00> : vector<128x32xf32>
    %29 = tpu.matmul %27, %28, %cst_17 {dimension_numbers = #tpu.dot_dimension_numbers<[1], [0], [0], [1], [0, 0, 1, 1], [], []>} : vector<128x16xf32>, vector<16x32xf32>, vector<128x32xf32> -> vector<128x32xf32>
    %c0_18 = arith.constant 0 : index
    %c0_19 = arith.constant 0 : index
    %30 = vector.load %arg8[%c0_18, %c0_19] : memref<1x32xf32, #tpu.memory_space<vmem>>, vector<1x32xf32>
    %31 = vector.broadcast %30 : vector<1x32xf32> to vector<128x32xf32>
    %32 = arith.addf %29, %31 : vector<128x32xf32>
    %c0_20 = arith.constant 0 : index
    %33 = memref.load %arg9[%c0_20] : memref<1xf32, #tpu.memory_space<smem>>
    %34 = vector.broadcast %33 : f32 to vector<128x32xf32>
    %35 = arith.mulf %34, %32 : vector<128x32xf32>
    %36 = arith.addf %7, %35 : vector<128x32xf32>
    %c0_21 = arith.constant 0 : index
    %c0_22 = arith.constant 0 : index
    %c0_23 = arith.constant 0 : index
    %37 = vector.load %arg10[%c0_21, %c0_22, %c0_23] : memref<1x128x32xf32, #tpu.memory_space<vmem>>, vector<1x128x32xf32>
    %38 = vector.shape_cast %37 : vector<1x128x32xf32> to vector<128x32xf32>
    %39 = vector.shape_cast %36 : vector<128x32xf32> to vector<1x128x32xf32>
    tpu.vector_store %arg10[%c0_21, %c0_22, %c0_23], %39 {strides = array<i32>} : memref<1x128x32xf32, #tpu.memory_space<vmem>>, vector<1x128x32xf32>,
    return
  }
  func.func @transform_0(%arg0: i32, %arg1: i32) -> (i32, i32, i32) {
    %c0_i32 = arith.constant 0 : i32
    %c0_i32_0 = arith.constant 0 : i32
    %c0_i32_1 = arith.constant 0 : i32
    return %arg0, %c0_i32, %c0_i32_0 : i32, i32, i32
  }
  func.func @transform_1(%arg0: i32, %arg1: i32) -> (i32, i32) {
    %c0_i32 = arith.constant 0 : i32
    %c0_i32_0 = arith.constant 0 : i32
    %c0_i32_1 = arith.constant 0 : i32
    return %c0_i32, %c0_i32_0 : i32, i32
  }
  func.func @transform_2(%arg0: i32, %arg1: i32) -> (i32, i32) {
    %c0_i32 = arith.constant 0 : i32
    %c0_i32_0 = arith.constant 0 : i32
    %c0_i32_1 = arith.constant 0 : i32
    return %c0_i32, %c0_i32_0 : i32, i32
  }
  func.func @transform_3(%arg0: i32, %arg1: i32) -> (i32, i32) {
    %c0_i32 = arith.constant 0 : i32
    %c0_i32_0 = arith.constant 0 : i32
    %c0_i32_1 = arith.constant 0 : i32
    return %c0_i32, %c0_i32_0 : i32, i32
  }
  func.func @transform_4(%arg0: i32, %arg1: i32) -> (i32, i32) {
    %c0_i32 = arith.constant 0 : i32
    %c0_i32_0 = arith.constant 0 : i32
    %c0_i32_1 = arith.constant 0 : i32
    return %c0_i32, %c0_i32_0 : i32, i32
  }
  func.func @transform_5(%arg0: i32, %arg1: i32) -> (i32, i32) {
    %c0_i32 = arith.constant 0 : i32
    %c0_i32_0 = arith.constant 0 : i32
    %c0_i32_1 = arith.constant 0 : i32
    return %c0_i32, %c0_i32_0 : i32, i32
  }
  func.func @transform_6(%arg0: i32, %arg1: i32) -> (i32, i32) {
    %c0_i32 = arith.constant 0 : i32
    %c0_i32_0 = arith.constant 0 : i32
    %c0_i32_1 = arith.constant 0 : i32
    return %c0_i32, %c0_i32_0 : i32, i32
  }
  func.func @transform_7(%arg0: i32, %arg1: i32) -> i32 {
    %c0_i32 = arith.constant 0 : i32
    %c0_i32_0 = arith.constant 0 : i32
    return %c0_i32 : i32
  }
  func.func @transform_8(%arg0: i32, %arg1: i32) -> (i32, i32, i32) {
    %c0_i32 = arith.constant 0 : i32
    %c0_i32_0 = arith.constant 0 : i32
    return %arg0, %arg1, %c0_i32 : i32, i32, i32
  }
}

</mosaic_0001>

<llo_original>
// kernel: tpu_custom_call.1
$region0: #{tpu_custom_call.1}
  #allocation0 [shape = 'u32[]', space=smem, size = 0x4, offset = 0x4, fixed_abs, tag = 'smem constant byte address 0x4 - core index']
  #allocation1 [shape = 'u32[144,128]{1,0:T(1,128)}', space=vmem, size = 0x12000, scoped, tag = 'internal scratch']
  #allocation2 [shape = 'f32[64,128]{1,0:T(8,128)}', space=vmem, size = 0x8000, scoped, tag = 'scratch operand']
  #allocation3 [shape = 'f32[16,128]{1,0:T(8,128)}', space=vmem, size = 0x2000, scoped, tag = 'scratch operand']
  #allocation4 [shape = 'f32[8,64]{1,0:T(8,128)}', space=vmem, size = 0x1000, scoped, tag = 'scratch operand']
  #allocation5 [shape = 'f32[64,16]{1,0:T(8,128)}', space=vmem, size = 0x8000, scoped, tag = 'scratch operand']
  #allocation6 [shape = 'f32[1]{0:T(128)S(6)}', space=smem, size = 0x200, scoped, tag = 'scoped memory for tpu_custom_call.1']
  %s0 = inlined_call_operand.vmem [shape: f32[2,256,32], index: 0, kind: input, shape index: {}]
  %s1 = inlined_call_operand.vmem [shape: f32[32,8], index: 1, kind: input, shape index: {}]
  %s2 = inlined_call_operand.vmem [shape: f32[1,8], index: 2, kind: input, shape index: {}]
  %s3 = inlined_call_operand.vmem [shape: f32[32,128], index: 3, kind: input, shape index: {}]
  %s4 = inlined_call_operand.vmem [shape: f32[1,128], index: 4, kind: input, shape index: {}]
  %s5 = inlined_call_operand.vmem [shape: f32[16,32], index: 5, kind: input, shape index: {}]
  %s6 = inlined_call_operand.vmem [shape: f32[1,32], index: 6, kind: input, shape index: {}]
  %s7 = inlined_call_operand.<no memory space> [shape: f32[1], index: 7, kind: input, shape index: {}]
  %s8 = inlined_call_operand.vmem [shape: f32[2,256,32], index: 8, kind: output, shape index: {}]
  %s9 = sld [smem:[#allocation0]]
  $region69: #{tpu_custom_call.1} parent=0
    _
  %s11 = ssub.s32 1, %s9
  %s12 = scalar_select 0, %s11, %s9
  %13 = sst [smem:[#allocation6]] %s7
  loop: start=0, step=1, limit=6
  $region2: #{tpu_custom_call.1} parent=0 // loop_pre_header
    _
  $region3: #{tpu_custom_call.1} parent=0 // loop_header
    %s15 = sphi 0, %s19
    %p16 = scmp.ge.s32.totalorder %s15, 6
    %s22 = sphi 0, %s34
    %s23 = sphi 0, %s30
    %s24 = sphi 0, %s22
    %s25 = sphi 0, %s23
    %s26 = sphi 0, %s24
    %s27 = sphi 0, %s25
    %s37 = sphi 0, %s39
    %s40 = sphi 0, %s37
    %s41 = sphi 0, %s40
    %s57 = sphi 0, %s41
    %s61 = sphi 0, %s61
    %s63 = sphi 0, %s61
    %s64 = sphi 0, %s63
    %s78 = sphi 0, %s64
    %s82 = sphi 0, %s82
    %s84 = sphi 0, %s82
    %s85 = sphi 0, %s84
    %s99 = sphi 0, %s85
    %s103 = sphi 0, %s103
    %s105 = sphi 0, %s103
    %s106 = sphi 0, %s105
    %s120 = sphi 0, %s106
    %s124 = sphi 0, %s124
    %s126 = sphi 0, %s124
    %s127 = sphi 0, %s126
    %s141 = sphi 0, %s127
    %s145 = sphi 0, %s145
    %s147 = sphi 0, %s145
    %s148 = sphi 0, %s147
    %s162 = sphi 0, %s148
    %s166 = sphi 0, %s166
    %s168 = sphi 0, %s166
    %s169 = sphi 0, %s168
    %s183 = sphi 0, %s169
    %s187 = sphi 0, %s187
    %s189 = sphi 0, %s187
    %s190 = sphi 0, %s189
    %s204 = sphi 0, %s190
    %s212 = sphi 0, %s214
    %s215 = sphi 0, %s212
    %s216 = sphi 0, %s215
    %s232 = sphi 0, %s216
  $region4: #{tpu_custom_call.1} parent=0 // loop_header_branch
    %18 = sbr.rel (%p16) target = $region8
  $region5: #{tpu_custom_call.1} parent=0 // loop_body
    %s20 = ssub.s32 %s15, 1
    %s21 = ssub.s32 %s15, 2
    %s28 = sadd.s32 1, %s23
    %p29 = scmp.ge.s32.totalorder %s28, 2
    %s30 = scalar_select %p29, 0, %s28
    %s31 = sadd.s32 1, %s22
    %s32 = scalar_select %p29, %s31, %s22
    %p33 = scmp.ge.s32.totalorder %s32, 2
    %s34 = scalar_select %p33, 0, %s32
    %s35 = ssub.s32 %s22, %s34
    %p36 = scmp.eq.s32.totalorder %s35, 0
    %s38 = sadd.s32 %s37, 1
    %s39 = scalar_select %p36, %s37, %s38
    %p42 = pneg %p36
    %p43 = scmp.eq.s32.totalorder %s15, 3
    %p44 = por %p42, %p43
    %p45 = scmp.ne.s32.totalorder %s37, %s40
    %p46 = scmp.eq.s32.totalorder %s15, 0
    %p47 = por %p45, %p46
    %p48 = scmp.ne.s32.totalorder %s37, %s40
    %p49 = scmp.eq.s32.totalorder %s20, 3
    %p50 = por %p48, %p49
    %p51 = scmp.ne.s32.totalorder %s40, %s41
    %p52 = scmp.eq.s32.totalorder %s20, 0
    %p53 = por %p51, %p52
    %p54 = scmp.ne.s32.totalorder %s40, %s41
    %p55 = scmp.eq.s32.totalorder %s21, 3
    %p56 = por %p54, %p55
    %p58 = scmp.ne.s32.totalorder %s41, %s57
    %p59 = scmp.eq.s32.totalorder %s21, 0
    %p60 = por %p58, %p59
    %s62 = sadd.s32 %s61, 1
    %p65 = scmp.eq.s32.totalorder %s15, 3
    %p66 = scmp.ne.s32.totalorder %s61, %s63
    %p67 = scmp.eq.s32.totalorder %s15, 0
    %p68 = por %p66, %p67
    %p69 = scmp.ne.s32.totalorder %s61, %s63
    %p70 = scmp.eq.s32.totalorder %s20, 3
    %p71 = por %p69, %p70
    %p72 = scmp.ne.s32.totalorder %s63, %s64
    %p73 = scmp.eq.s32.totalorder %s20, 0
    %p74 = por %p72, %p73
    %p75 = scmp.ne.s32.totalorder %s63, %s64
    %p76 = scmp.eq.s32.totalorder %s21, 3
    %p77 = por %p75, %p76
    %p79 = scmp.ne.s32.totalorder %s64, %s78
    %p80 = scmp.eq.s32.totalorder %s21, 0
    %p81 = por %p79, %p80
    %s83 = sadd.s32 %s82, 1
    %p86 = scmp.eq.s32.totalorder %s15, 3
    %p87 = scmp.ne.s32.totalorder %s82, %s84
    %p88 = scmp.eq.s32.totalorder %s15, 0
    %p89 = por %p87, %p88
    %p90 = scmp.ne.s32.totalorder %s82, %s84
    %p91 = scmp.eq.s32.totalorder %s20, 3
    %p92 = por %p90, %p91
    %p93 = scmp.ne.s32.totalorder %s84, %s85
    %p94 = scmp.eq.s32.totalorder %s20, 0
    %p95 = por %p93, %p94
    %p96 = scmp.ne.s32.totalorder %s84, %s85
    %p97 = scmp.eq.s32.totalorder %s21, 3
    %p98 = por %p96, %p97
    %p100 = scmp.ne.s32.totalorder %s85, %s99
    %p101 = scmp.eq.s32.totalorder %s21, 0
    %p102 = por %p100, %p101
    %s104 = sadd.s32 %s103, 1
    %p107 = scmp.eq.s32.totalorder %s15, 3
    %p108 = scmp.ne.s32.totalorder %s103, %s105
    %p109 = scmp.eq.s32.totalorder %s15, 0
    %p110 = por %p108, %p109
    %p111 = scmp.ne.s32.totalorder %s103, %s105
    %p112 = scmp.eq.s32.totalorder %s20, 3
    %p113 = por %p111, %p112
    %p114 = scmp.ne.s32.totalorder %s105, %s106
    %p115 = scmp.eq.s32.totalorder %s20, 0
    %p116 = por %p114, %p115
    %p117 = scmp.ne.s32.totalorder %s105, %s106
    %p118 = scmp.eq.s32.totalorder %s21, 3
    %p119 = por %p117, %p118
    %p121 = scmp.ne.s32.totalorder %s106, %s120
    %p122 = scmp.eq.s32.totalorder %s21, 0
    %p123 = por %p121, %p122
    %s125 = sadd.s32 %s124, 1
    %p128 = scmp.eq.s32.totalorder %s15, 3
    %p129 = scmp.ne.s32.totalorder %s124, %s126
    %p130 = scmp.eq.s32.totalorder %s15, 0
    %p131 = por %p129, %p130
    %p132 = scmp.ne.s32.totalorder %s124, %s126
    %p133 = scmp.eq.s32.totalorder %s20, 3
    %p134 = por %p132, %p133
    %p135 = scmp.ne.s32.totalorder %s126, %s127
    %p136 = scmp.eq.s32.totalorder %s20, 0
    %p137 = por %p135, %p136
    %p138 = scmp.ne.s32.totalorder %s126, %s127
    %p139 = scmp.eq.s32.totalorder %s21, 3
    %p140 = por %p138, %p139
    %p142 = scmp.ne.s32.totalorder %s127, %s141
    %p143 = scmp.eq.s32.totalorder %s21, 0
    %p144 = por %p142, %p143
    %s146 = sadd.s32 %s145, 1
    %p149 = scmp.eq.s32.totalorder %s15, 3
    %p150 = scmp.ne.s32.totalorder %s145, %s147
    %p151 = scmp.eq.s32.totalorder %s15, 0
    %p152 = por %p150, %p151
    %p153 = scmp.ne.s32.totalorder %s145, %s147
    %p154 = scmp.eq.s32.totalorder %s20, 3
    %p155 = por %p153, %p154
    %p156 = scmp.ne.s32.totalorder %s147, %s148
    %p157 = scmp.eq.s32.totalorder %s20, 0
    %p158 = por %p156, %p157
    %p159 = scmp.ne.s32.totalorder %s147, %s148
    %p160 = scmp.eq.s32.totalorder %s21, 3
    %p161 = por %p159, %p160
    %p163 = scmp.ne.s32.totalorder %s148, %s162
    %p164 = scmp.eq.s32.totalorder %s21, 0
    %p165 = por %p163, %p164
    %s167 = sadd.s32 %s166, 1
    %p170 = scmp.eq.s32.totalorder %s15, 3
    %p171 = scmp.ne.s32.totalorder %s166, %s168
    %p172 = scmp.eq.s32.totalorder %s15, 0
    %p173 = por %p171, %p172
    %p174 = scmp.ne.s32.totalorder %s166, %s168
    %p175 = scmp.eq.s32.totalorder %s20, 3
    %p176 = por %p174, %p175
    %p177 = scmp.ne.s32.totalorder %s168, %s169
    %p178 = scmp.eq.s32.totalorder %s20, 0
    %p179 = por %p177, %p178
    %p180 = scmp.ne.s32.totalorder %s168, %s169
    %p181 = scmp.eq.s32.totalorder %s21, 3
    %p182 = por %p180, %p181
    %p184 = scmp.ne.s32.totalorder %s169, %s183
    %p185 = scmp.eq.s32.totalorder %s21, 0
    %p186 = por %p184, %p185
    %s188 = sadd.s32 %s187, 1
    %p191 = scmp.eq.s32.totalorder %s15, 3
    %p192 = scmp.ne.s32.totalorder %s187, %s189
    %p193 = scmp.eq.s32.totalorder %s15, 0
    %p194 = por %p192, %p193
    %p195 = scmp.ne.s32.totalorder %s187, %s189
    %p196 = scmp.eq.s32.totalorder %s20, 3
    %p197 = por %p195, %p196
    %p198 = scmp.ne.s32.totalorder %s189, %s190
    %p199 = scmp.eq.s32.totalorder %s20, 0
    %p200 = por %p198, %p199
    %p201 = scmp.ne.s32.totalorder %s189, %s190
    %p202 = scmp.eq.s32.totalorder %s21, 3
    %p203 = por %p201, %p202
    %p205 = scmp.ne.s32.totalorder %s190, %s204
    %p206 = scmp.eq.s32.totalorder %s21, 0
    %p207 = por %p205, %p206
    %s208 = ssub.s32 %s22, %s34
    %s209 = ssub.s32 %s23, %s30
    %s210 = sor.u32 %s208, %s209
    %p211 = scmp.eq.s32.totalorder %s210, 0
    %s213 = sadd.s32 %s212, 1
    %s214 = scalar_select %p211, %s212, %s213
    %p217 = pneg %p211
    %p218 = scmp.eq.s32.totalorder %s15, 3
    %p219 = por %p217, %p218
    %p220 = scmp.ne.s32.totalorder %s212, %s215
    %p221 = scmp.eq.s32.totalorder %s15, 0
    %p222 = por %p220, %p221
    %p223 = scmp.ne.s32.totalorder %s212, %s215
    %p224 = scmp.eq.s32.totalorder %s20, 3
    %p225 = por %p223, %p224
    %p226 = scmp.ne.s32.totalorder %s215, %s216
    %p227 = scmp.eq.s32.totalorder %s20, 0
    %p228 = por %p226, %p227
    %p229 = scmp.ne.s32.totalorder %s215, %s216
    %p230 = scmp.eq.s32.totalorder %s21, 3
    %p231 = por %p229, %p230
    %p233 = scmp.ne.s32.totalorder %s216, %s232
    %p234 = scmp.eq.s32.totalorder %s21, 0
    %p235 = por %p233, %p234
    %p236 = scmp.le.s32.totalorder 1, %s15
    %p237 = scmp.lt.s32.totalorder %s15, 5
    %p238 = pnand %p236, %p237
    %p239 = pneg %p238
    // Predicated region
    $region9: #{tpu_custom_call.1} parent=5 // pred_check
      _
    $region10: #{tpu_custom_call.1} parent=5 // pred_check_branch
      %241 = sbr.rel (%p238) target = $region12
    $region11: #{tpu_custom_call.1} parent=5 // pred_region
      %s242 = ssub.s32 %s15, 1
      // Predicated region
      $region13: #{tpu_custom_call.1} parent=11 // pred_check
        %p243 = pneg %p74
      $region14: #{tpu_custom_call.1} parent=11 // pred_check_branch
        %245 = sbr.rel (%p243) target = $region16
      $region15: #{tpu_custom_call.1} parent=11 // pred_region
        _
      $region16: #{tpu_custom_call.1} parent=11 // pred_fallthru
        _
      // Predicated region
      $region17: #{tpu_custom_call.1} parent=11 // pred_check
        %p246 = pneg %p95
      $region18: #{tpu_custom_call.1} parent=11 // pred_check_branch
        %248 = sbr.rel (%p246) target = $region20
      $region19: #{tpu_custom_call.1} parent=11 // pred_region
        _
      $region20: #{tpu_custom_call.1} parent=11 // pred_fallthru
        _
      // Predicated region
      $region21: #{tpu_custom_call.1} parent=11 // pred_check
        %p249 = pneg %p116
      $region22: #{tpu_custom_call.1} parent=11 // pred_check_branch
        %251 = sbr.rel (%p249) target = $region24
      $region23: #{tpu_custom_call.1} parent=11 // pred_region
        _
      $region24: #{tpu_custom_call.1} parent=11 // pred_fallthru
        _
      // Predicated region
      $region25: #{tpu_custom_call.1} parent=11 // pred_check
        %p252 = pneg %p137
      $region26: #{tpu_custom_call.1} parent=11 // pred_check_branch
        %254 = sbr.rel (%p252) target = $region28
      $region27: #{tpu_custom_call.1} parent=11 // pred_region
        _
      $region28: #{tpu_custom_call.1} parent=11 // pred_fallthru
        _
      // Predicated region
      $region29: #{tpu_custom_call.1} parent=11 // pred_check
        %p255 = pneg %p158
      $region30: #{tpu_custom_call.1} parent=11 // pred_check_branch
        %257 = sbr.rel (%p255) target = $region32
      $region31: #{tpu_custom_call.1} parent=11 // pred_region
        _
      $region32: #{tpu_custom_call.1} parent=11 // pred_fallthru
        _
      // Predicated region
      $region33: #{tpu_custom_call.1} parent=11 // pred_check
        %p258 = pneg %p179
      $region34: #{tpu_custom_call.1} parent=11 // pred_check_branch
        %260 = sbr.rel (%p258) target = $region36
      $region35: #{tpu_custom_call.1} parent=11 // pred_region
        _
      $region36: #{tpu_custom_call.1} parent=11 // pred_fallthru
        _
      // Predicated region
      $region37: #{tpu_custom_call.1} parent=11 // pred_check
        %p261 = pneg %p200
      $region38: #{tpu_custom_call.1} parent=11 // pred_check_branch
        %263 = sbr.rel (%p261) target = $region40
      $region39: #{tpu_custom_call.1} parent=11 // pred_region
        _
      $region40: #{tpu_custom_call.1} parent=11 // pred_fallthru
        _
    $region12: #{tpu_custom_call.1} parent=5 // pred_fallthru
      _
    %p264 = scmp.lt.s32.totalorder %s15, 4
    // Predicated region
    $region41: #{tpu_custom_call.1} parent=5 // pred_check
      %p265 = pneg %p264
    $region42: #{tpu_custom_call.1} parent=5 // pred_check_branch
      %267 = sbr.rel (%p265) target = $region44
    $region43: #{tpu_custom_call.1} parent=5 // pred_region
      // Predicated region
      $region45: #{tpu_custom_call.1} parent=43 // pred_check
        %p268 = pneg %p47
      $region46: #{tpu_custom_call.1} parent=43 // pred_check_branch
        %270 = sbr.rel (%p268) target = $region48
      $region47: #{tpu_custom_call.1} parent=43 // pred_region
        %p271 = scmp.lt.s32.totalorder %s22, 1
        %s272 = scalar_select %p271, %s22, 1
        %s273 = smul.addr %s272, 32
        %s274 = smul.addr %s273, 8
        %s275 = scalar_lea.vmem %s0, %s274
      $region48: #{tpu_custom_call.1} parent=43 // pred_fallthru
        _
    $region44: #{tpu_custom_call.1} parent=5 // pred_fallthru
      _
    %p276 = scmp.le.s32.totalorder 1, %s15
    %p277 = scmp.lt.s32.totalorder %s15, 5
    %p278 = pnand %p276, %p277
    %p279 = pneg %p278
    // Predicated region
    $region49: #{tpu_custom_call.1} parent=5 // pred_check
      _
    $region50: #{tpu_custom_call.1} parent=5 // pred_check_branch
      %281 = sbr.rel (%p278) target = $region52
    $region51: #{tpu_custom_call.1} parent=5 // pred_region
      %s282 = ssub.s32 %s15, 1
      %p283 = scmp.lt.s32.totalorder %s24, 1
      %s284 = scalar_select %p283, %s24, 1
      %s285 = smul.addr %s284, 32
      %s286 = smul.addr %s285, 8
      %s287 = scalar_lea.vmem %s0, %s286
      %p288 = pneg %p53
      %p289 = pneg %p50
      %p290 = pneg %p74
      %p291 = pneg %p71
      %p292 = pneg %p95
      %p293 = pneg %p92
      %p294 = pneg %p116
      %p295 = pneg %p113
      %p296 = pneg %p137
      %p297 = pneg %p134
      %p298 = pneg %p158
      %p299 = pneg %p155
      %p300 = pneg %p179
      %p301 = pneg %p176
      %p302 = pneg %p200
      %p303 = pneg %p197
      %p304 = pneg %p228
      %p305 = pneg %p225
      %s306 = smul.u32 16, %s25
      %p307 = scmp.lt.s32.totalorder %s24, 1
      %s308 = scalar_select %p307, %s24, 1
      %p309 = scmp.lt.s32.totalorder %s306, 31
      %s310 = scalar_select %p309, %s306, 31
      %s311 = smul.addr %s308, 32
      %s312 = sadd.s32 %s310, %s311
      %s313 = smul.addr %s312, 8
      %s314 = scalar_lea.vmem %s8, %s313
      %p315 = scmp.lt.s32.totalorder %s24, 1
      %s316 = scalar_select %p315, %s24, 1
      %s317 = smul.addr %s316, 32
      %s318 = smul.addr %s317, 8
      %s319 = scalar_lea.vmem %s0, %s318
      %s320 = smul.u32 16, %s25
      %p321 = scmp.lt.s32.totalorder %s24, 1
      %s322 = scalar_select %p321, %s24, 1
      %p323 = scmp.lt.s32.totalorder %s320, 31
      %s324 = scalar_select %p323, %s320, 31
      %s325 = smul.addr %s322, 32
      %s326 = sadd.s32 %s324, %s325
      %s327 = smul.addr %s326, 8
      %s328 = scalar_lea.vmem %s8, %s327
      %s329 = smul.u32 16, %s25
      %p330 = scmp.eq.s32.totalorder %s25, 0
      // Predicated region
      $region53: #{tpu_custom_call.1} parent=51 // pred_check
        %p331 = pneg %p330
      $region54: #{tpu_custom_call.1} parent=51 // pred_check_branch
        %333 = sbr.rel (%p331) target = $region56
      $region55: #{tpu_custom_call.1} parent=51 // pred_region
        %v334 = vld [vmem:[%s319] sm:$0xff]
        %v335 = vld [vmem:[%s319 + $0x8] sm:$0xff]
        %v336 = vld [vmem:[%s319 + $0x10] sm:$0xff]
        %v337 = vld [vmem:[%s319 + $0x18] sm:$0xff]
        %v338 = vld [vmem:[%s3] sm:$0xff]
        %v339 = vld [vmem:[%s3 + $0x8] sm:$0xff]
        %v340 = vld [vmem:[%s3 + $0x10] sm:$0xff]
        %v341 = vld [vmem:[%s3 + $0x18] sm:$0xff]
        %v342 = vld [vmem:[%s4] sm:$0x1]
        %v344 = vlaneseq
        %v345 = vshrl.u32 %v344, 7
        %v346 = vsub.s32 0, %v345
        %v347 = vrot.slane %v342, %v346
        %vm349 = vcmask 261120
        %v351 = vsel %vm349, %v334, 0
        %v354 = vsel %vm349, %v335, 0
        %v357 = vsel %vm349, %v336, 0
        %v360 = vsel %vm349, %v337, 0
        %362 = vmatprep.subr.mxu0 0.0
        %363 = vmatpush1.msra.mxu0 %v338
        %364 = vmatprep.subr.mxu0 0.0
        %365 = vmatpush1.msra.mxu0 %v339
        %366 = vmatprep.subr.mxu0 0.0
        %367 = vmatpush1.msra.mxu0 %v340
        %368 = vmatprep.subr.mxu0 0.0
        %369 = vmatpush1.msra.mxu0 %v341
        %370 = vmatprep.subr.mxu0 0.0
        %371 = vmatpush1.msra.mxu0 0.0
        %372 = vmatprep.subr.mxu0 0.0
        %373 = vmatpush1.msra.mxu0 0.0
        %374 = vmatprep.subr.mxu0 0.0
        %375 = vmatpush1.msra.mxu0 0.0
        %376 = vmatprep.subr.mxu0 0.0
        %377 = vmatpush1.msra.mxu0 0.0
        %378 = vmatprep.subr.mxu0 0.0
        %379 = vmatpush1.msra.mxu0 0.0
        %380 = vmatprep.subr.mxu0 0.0
        %381 = vmatpush1.msra.mxu0 0.0
        %382 = vmatprep.subr.mxu0 0.0
        %383 = vmatpush1.msra.mxu0 0.0
        %384 = vmatprep.subr.mxu0 0.0
        %385 = vmatpush1.msra.mxu0 0.0
        %386 = vmatprep.subr.mxu0 0.0
        %387 = vmatpush1.msra.mxu0 0.0
        %388 = vmatprep.subr.mxu0 0.0
        %389 = vmatpush1.msra.mxu0 0.0
        %390 = vmatprep.subr.mxu0 0.0
        %391 = vmatpush1.msra.mxu0 0.0
        %392 = vmatprep.subr.mxu0 0.0
        %393 = vmatpush1.msra.mxu0 0.0
        %394 = vmatprep.subr.mxu0 0.0
        %395 = vmatpush1.msra.mxu0 0.0
        %396 = vmatprep.subr.mxu0 0.0
        %397 = vmatpush1.msra.mxu0 0.0
        %398 = vmatprep.subr.mxu0 0.0
        %399 = vmatpush1.msra.mxu0 0.0
        %400 = vmatprep.subr.mxu0 0.0
        %401 = vmatpush1.msra.mxu0 0.0
        %402 = vmatprep.subr.mxu0 0.0
        %403 = vmatpush1.msra.mxu0 0.0
        %404 = vmatprep.subr.mxu0 0.0
        %405 = vmatpush1.msra.mxu0 0.0
        %406 = vmatprep.subr.mxu0 0.0
        %407 = vmatpush1.msra.mxu0 0.0
        %408 = vmatprep.subr.mxu0 0.0
        %409 = vmatpush1.msra.mxu0 0.0
        %410 = vmatprep.subr.mxu0 0.0
        %411 = vmatpush1.msra.mxu0 0.0
        %412 = vmatprep.subr.mxu0 0.0
        %413 = vmatpush1.msra.mxu0 0.0
        %414 = vmatprep.subr.mxu0 0.0
        %415 = vmatpush1.msra.mxu0 0.0
        %416 = vmatprep.subr.mxu0 0.0
        %417 = vmatpush1.msra.mxu0 0.0
        %418 = vmatprep.subr.mxu0 0.0
        %419 = vmatpush1.msra.mxu0 0.0
        %420 = vmatprep.subr.mxu0 0.0
        %421 = vmatpush1.msra.mxu0 0.0
        %422 = vmatprep.subr.mxu0 0.0
        %423 = vmatpush1.msra.mxu0 0.0
        %424 = vmatprep.subr.mxu0 0.0
        %425 = vmatpush1.msra.mxu0 0.0
        %426 = vmatprep.mubr.f32.mxu0 0.0
        %427 = vmatmul.mubr.f32.gmra.mrb[0].mxu0 %v351
        %v428 = vpop.f32.mrb[0].mxu0
        %v429 = vadd.f32 %v347, %v428
        %v430 = vpop.f32.mrb[0].mxu0
        %431 = vmatprep.mubr.f32.mxu0 0.0
        %432 = vmatmul.mubr.f32.gmra.mrb[0].mxu0 %v354
        %v433 = vpop.f32.mrb[0].mxu0
        %v434 = vadd.f32 %v347, %v433
        %v435 = vpop.f32.mrb[0].mxu0
        %436 = vmatprep.mubr.f32.mxu0 0.0
        %437 = vmatmul.mubr.f32.gmra.mrb[0].mxu0 %v357
        %v438 = vpop.f32.mrb[0].mxu0
        %v439 = vadd.f32 %v347, %v438
        %v440 = vpop.f32.mrb[0].mxu0
        %441 = vmatprep.mubr.f32.mxu0 0.0
        %442 = vmatmul.mubr.f32.gmra.mrb[0].mxu0 %v360
        %v443 = vpop.f32.mrb[0].mxu0
        %v444 = vadd.f32 %v347, %v443
        %v445 = vpop.f32.mrb[0].mxu0
        %446 = vdwg.mxu0
        %v447 = vmax.f32 %v429, %v439
        %v448 = vmax.f32 %v434, %v444
        %449 = vst [vmem:[#allocation3] sm:$0xff] %v447
        %450 = vst [vmem:[#allocation3 + $0x8] sm:$0xff] %v448
        %v451 = vld [vmem:[#allocation3] ss:$2 sm:$0xff]
        %s452 = scalar_lea.vmem [#allocation3], 1
        %v453 = vld [vmem:[%s452] ss:$2 sm:$0xff]
        %v454 = vmax.f32 %v451, %v453
        %455 = vst [vmem:[#allocation2] sm:$0xff] %v454
        %v456 = vld [vmem:[%s319 + $0x20] sm:$0xff]
        %v457 = vld [vmem:[%s319 + $0x28] sm:$0xff]
        %v458 = vld [vmem:[%s319 + $0x30] sm:$0xff]
        %v459 = vld [vmem:[%s319 + $0x38] sm:$0xff]
        %v460 = vld [vmem:[%s3] sm:$0xff]
        %v461 = vld [vmem:[%s3 + $0x8] sm:$0xff]
        %v462 = vld [vmem:[%s3 + $0x10] sm:$0xff]
        %v463 = vld [vmem:[%s3 + $0x18] sm:$0xff]
        %v464 = vld [vmem:[%s4] sm:$0x1]
        %v466 = vlaneseq
        %v467 = vshrl.u32 %v466, 7
        %v468 = vsub.s32 0, %v467
        %v469 = vrot.slane %v464, %v468
        %v472 = vsel %vm349, %v456, 0
        %v475 = vsel %vm349, %v457, 0
        %v478 = vsel %vm349, %v458, 0
        %v481 = vsel %vm349, %v459, 0
        %483 = vmatprep.subr.mxu0 0.0
        %484 = vmatpush1.msra.mxu0 %v460
        %485 = vmatprep.subr.mxu0 0.0
        %486 = vmatpush1.msra.mxu0 %v461
        %487 = vmatprep.subr.mxu0 0.0
        %488 = vmatpush1.msra.mxu0 %v462
        %489 = vmatprep.subr.mxu0 0.0
        %490 = vmatpush1.msra.mxu0 %v463
        %491 = vmatprep.subr.mxu0 0.0
        %492 = vmatpush1.msra.mxu0 0.0
        %493 = vmatprep.subr.mxu0 0.0
        %494 = vmatpush1.msra.mxu0 0.0
        %495 = vmatprep.subr.mxu0 0.0
        %496 = vmatpush1.msra.mxu0 0.0
        %497 = vmatprep.subr.mxu0 0.0
        %498 = vmatpush1.msra.mxu0 0.0
        %499 = vmatprep.subr.mxu0 0.0
        %500 = vmatpush1.msra.mxu0 0.0
        %501 = vmatprep.subr.mxu0 0.0
        %502 = vmatpush1.msra.mxu0 0.0
        %503 = vmatprep.subr.mxu0 0.0
        %504 = vmatpush1.msra.mxu0 0.0
        %505 = vmatprep.subr.mxu0 0.0
        %506 = vmatpush1.msra.mxu0 0.0
        %507 = vmatprep.subr.mxu0 0.0
        %508 = vmatpush1.msra.mxu0 0.0
        %509 = vmatprep.subr.mxu0 0.0
        %510 = vmatpush1.msra.mxu0 0.0
        %511 = vmatprep.subr.mxu0 0.0
        %512 = vmatpush1.msra.mxu0 0.0
        %513 = vmatprep.subr.mxu0 0.0
        %514 = vmatpush1.msra.mxu0 0.0
        %515 = vmatprep.subr.mxu0 0.0
        %516 = vmatpush1.msra.mxu0 0.0
        %517 = vmatprep.subr.mxu0 0.0
        %518 = vmatpush1.msra.mxu0 0.0
        %519 = vmatprep.subr.mxu0 0.0
        %520 = vmatpush1.msra.mxu0 0.0
        %521 = vmatprep.subr.mxu0 0.0
        %522 = vmatpush1.msra.mxu0 0.0
        %523 = vmatprep.subr.mxu0 0.0
        %524 = vmatpush1.msra.mxu0 0.0
        %525 = vmatprep.subr.mxu0 0.0
        %526 = vmatpush1.msra.mxu0 0.0
        %527 = vmatprep.subr.mxu0 0.0
        %528 = vmatpush1.msra.mxu0 0.0
        %529 = vmatprep.subr.mxu0 0.0
        %530 = vmatpush1.msra.mxu0 0.0
        %531 = vmatprep.subr.mxu0 0.0
        %532 = vmatpush1.msra.mxu0 0.0
        %533 = vmatprep.subr.mxu0 0.0
        %534 = vmatpush1.msra.mxu0 0.0
        %535 = vmatprep.subr.mxu0 0.0
        %536 = vmatpush1.msra.mxu0 0.0
        %537 = vmatprep.subr.mxu0 0.0
        %538 = vmatpush1.msra.mxu0 0.0
        %539 = vmatprep.subr.mxu0 0.0
        %540 = vmatpush1.msra.mxu0 0.0
        %541 = vmatprep.subr.mxu0 0.0
        %542 = vmatpush1.msra.mxu0 0.0
        %543 = vmatprep.subr.mxu0 0.0
        %544 = vmatpush1.msra.mxu0 0.0
        %545 = vmatprep.subr.mxu0 0.0
        %546 = vmatpush1.msra.mxu0 0.0
        %547 = vmatprep.mubr.f32.mxu0 0.0
        %548 = vmatmul.mubr.f32.gmra.mrb[0].mxu0 %v472
        %v549 = vpop.f32.mrb[0].mxu0
        %v550 = vadd.f32 %v469, %v549
        %v551 = vpop.f32.mrb[0].mxu0
        %552 = vmatprep.mubr.f32.mxu0 0.0
        %553 = vmatmul.mubr.f32.gmra.mrb[0].mxu0 %v475
        %v554 = vpop.f32.mrb[0].mxu0
        %v555 = vadd.f32 %v469, %v554
        %v556 = vpop.f32.mrb[0].mxu0
        %557 = vmatprep.mubr.f32.mxu0 0.0
        %558 = vmatmul.mubr.f32.gmra.mrb[0].mxu0 %v478
        %v559 = vpop.f32.mrb[0].mxu0
        %v560 = vadd.f32 %v469, %v559
        %v561 = vpop.f32.mrb[0].mxu0
        %562 = vmatprep.mubr.f32.mxu0 0.0
        %563 = vmatmul.mubr.f32.gmra.mrb[0].mxu0 %v481
        %v564 = vpop.f32.mrb[0].mxu0
        %v565 = vadd.f32 %v469, %v564
        %v566 = vpop.f32.mrb[0].mxu0
        %567 = vdwg.mxu0
        %v568 = vmax.f32 %v550, %v560
        %v569 = vmax.f32 %v555, %v565
        %570 = vst [vmem:[#allocation3] sm:$0xff] %v568
        %571 = vst [vmem:[#allocation3 + $0x8] sm:$0xff] %v569
        %v572 = vld [vmem:[#allocation3] ss:$2 sm:$0xff]
        %v573 = vld [vmem:[%s452] ss:$2 sm:$0xff]
        %v574 = vmax.f32 %v572, %v573
        %575 = vst [vmem:[#allocation2 + $0x8] sm:$0xff] %v574
        %v576 = vld [vmem:[%s319 + $0x40] sm:$0xff]
        %v577 = vld [vmem:[%s319 + $0x48] sm:$0xff]
        %v578 = vld [vmem:[%s319 + $0x50] sm:$0xff]
        %v579 = vld [vmem:[%s319 + $0x58] sm:$0xff]
        %v580 = vld [vmem:[%s3] sm:$0xff]
        %v581 = vld [vmem:[%s3 + $0x8] sm:$0xff]
        %v582 = vld [vmem:[%s3 + $0x10] sm:$0xff]
        %v583 = vld [vmem:[%s3 + $0x18] sm:$0xff]
        %v584 = vld [vmem:[%s4] sm:$0x1]
        %v586 = vlaneseq
        %v587 = vshrl.u32 %v586, 7
        %v588 = vsub.s32 0, %v587
        %v589 = vrot.slane %v584, %v588
        %v592 = vsel %vm349, %v576, 0
        %v595 = vsel %vm349, %v577, 0
        %v598 = vsel %vm349, %v578, 0
        %v601 = vsel %vm349, %v579, 0
        %603 = vmatprep.subr.mxu0 0.0
        %604 = vmatpush1.msra.mxu0 %v580
        %605 = vmatprep.subr.mxu0 0.0
        %606 = vmatpush1.msra.mxu0 %v581
        %607 = vmatprep.subr.mxu0 0.0
        %608 = vmatpush1.msra.mxu0 %v582
        %609 = vmatprep.subr.mxu0 0.0
        %610 = vmatpush1.msra.mxu0 %v583
        %611 = vmatprep.subr.mxu0 0.0
        %612 = vmatpush1.msra.mxu0 0.0
        %613 = vmatprep.subr.mxu0 0.0
        %614 = vmatpush1.msra.mxu0 0.0
        %615 = vmatprep.subr.mxu0 0.0
        %616 = vmatpush1.msra.mxu0 0.0
        %617 = vmatprep.subr.mxu0 0.0
        %618 = vmatpush1.msra.mxu0 0.0
        %619 = vmatprep.subr.mxu0 0.0
        %620 = vmatpush1.msra.mxu0 0.0
        %621 = vmatprep.subr.mxu0 0.0
        %622 = vmatpush1.msra.mxu0 0.0
        %623 = vmatprep.subr.mxu0 0.0
        %624 = vmatpush1.msra.mxu0 0.0
        %625 = vmatprep.subr.mxu0 0.0
        %626 = vmatpush1.msra.mxu0 0.0
        %627 = vmatprep.subr.mxu0 0.0
        %628 = vmatpush1.msra.mxu0 0.0
        %629 = vmatprep.subr.mxu0 0.0
        %630 = vmatpush1.msra.mxu0 0.0
        %631 = vmatprep.subr.mxu0 0.0
        %632 = vmatpush1.msra.mxu0 0.0
        %633 = vmatprep.subr.mxu0 0.0
        %634 = vmatpush1.msra.mxu0 0.0
        %635 = vmatprep.subr.mxu0 0.0
        %636 = vmatpush1.msra.mxu0 0.0
        %637 = vmatprep.subr.mxu0 0.0
        %638 = vmatpush1.msra.mxu0 0.0
        %639 = vmatprep.subr.mxu0 0.0
        %640 = vmatpush1.msra.mxu0 0.0
        %641 = vmatprep.subr.mxu0 0.0
        %642 = vmatpush1.msra.mxu0 0.0
        %643 = vmatprep.subr.mxu0 0.0
        %644 = vmatpush1.msra.mxu0 0.0
        %645 = vmatprep.subr.mxu0 0.0
        %646 = vmatpush1.msra.mxu0 0.0
        %647 = vmatprep.subr.mxu0 0.0
        %648 = vmatpush1.msra.mxu0 0.0
        %649 = vmatprep.subr.mxu0 0.0
        %650 = vmatpush1.msra.mxu0 0.0
        %651 = vmatprep.subr.mxu0 0.0
        %652 = vmatpush1.msra.mxu0 0.0
        %653 = vmatprep.subr.mxu0 0.0
        %654 = vmatpush1.msra.mxu0 0.0
        %655 = vmatprep.subr.mxu0 0.0
        %656 = vmatpush1.msra.mxu0 0.0
        %657 = vmatprep.subr.mxu0 0.0
        %658 = vmatpush1.msra.mxu0 0.0
        %659 = vmatprep.subr.mxu0 0.0
        %660 = vmatpush1.msra.mxu0 0.0
        %661 = vmatprep.subr.mxu0 0.0
        %662 = vmatpush1.msra.mxu0 0.0
        %663 = vmatprep.subr.mxu0 0.0
        %664 = vmatpush1.msra.mxu0 0.0
        %665 = vmatprep.subr.mxu0 0.0
        %666 = vmatpush1.msra.mxu0 0.0
        %667 = vmatprep.mubr.f32.mxu0 0.0
        %668 = vmatmul.mubr.f32.gmra.mrb[0].mxu0 %v592
        %v669 = vpop.f32.mrb[0].mxu0
        %v670 = vadd.f32 %v589, %v669
        %v671 = vpop.f32.mrb[0].mxu0
        %672 = vmatprep.mubr.f32.mxu0 0.0
        %673 = vmatmul.mubr.f32.gmra.mrb[0].mxu0 %v595
        %v674 = vpop.f32.mrb[0].mxu0
        %v675 = vadd.f32 %v589, %v674
        %v676 = vpop.f32.mrb[0].mxu0
        %677 = vmatprep.mubr.f32.mxu0 0.0
        %678 = vmatmul.mubr.f32.gmra.mrb[0].mxu0 %v598
        %v679 = vpop.f32.mrb[0].mxu0
        %v680 = vadd.f32 %v589, %v679
        %v681 = vpop.f32.mrb[0].mxu0
        %682 = vmatprep.mubr.f32.mxu0 0.0
        %683 = vmatmul.mubr.f32.gmra.mrb[0].mxu0 %v601
        %v684 = vpop.f32.mrb[0].mxu0
        %v685 = vadd.f32 %v589, %v684
        %v686 = vpop.f32.mrb[0].mxu0
        %687 = vdwg.mxu0
        %v688 = vmax.f32 %v670, %v680
        %v689 = vmax.f32 %v675, %v685
        %690 = vst [vmem:[#allocation3] sm:$0xff] %v688
        %691 = vst [vmem:[#allocation3 + $0x8] sm:$0xff] %v689
        %v692 = vld [vmem:[#allocation3] ss:$2 sm:$0xff]
        %v693 = vld [vmem:[%s452] ss:$2 sm:$0xff]
        %v694 = vmax.f32 %v692, %v693
        %695 = vst [vmem:[#allocation2 + $0x10] sm:$0xff] %v694
        %v696 = vld [vmem:[%s319 + $0x60] sm:$0xff]
        %v697 = vld [vmem:[%s319 + $0x68] sm:$0xff]
        %v698 = vld [vmem:[%s319 + $0x70] sm:$0xff]
        %v699 = vld [vmem:[%s319 + $0x78] sm:$0xff]
        %v700 = vld [vmem:[%s3] sm:$0xff]
        %v701 = vld [vmem:[%s3 + $0x8] sm:$0xff]
        %v702 = vld [vmem:[%s3 + $0x10] sm:$0xff]
        %v703 = vld [vmem:[%s3 + $0x18] sm:$0xff]
        %v704 = vld [vmem:[%s4] sm:$0x1]
        %v706 = vlaneseq
        %v707 = vshrl.u32 %v706, 7
        %v708 = vsub.s32 0, %v707
        %v709 = vrot.slane %v704, %v708
        %v712 = vsel %vm349, %v696, 0
        %v715 = vsel %vm349, %v697, 0
        %v718 = vsel %vm349, %v698, 0
        %v721 = vsel %vm349, %v699, 0
        %723 = vmatprep.subr.mxu0 0.0
        %724 = vmatpush1.msra.mxu0 %v700
        %725 = vmatprep.subr.mxu0 0.0
        %726 = vmatpush1.msra.mxu0 %v701
        %727 = vmatprep.subr.mxu0 0.0
        %728 = vmatpush1.msra.mxu0 %v702
        %729 = vmatprep.subr.mxu0 0.0
        %730 = vmatpush1.msra.mxu0 %v703
        %731 = vmatprep.subr.mxu0 0.0
        %732 = vmatpush1.msra.mxu0 0.0
        %733 = vmatprep.subr.mxu0 0.0
        %734 = vmatpush1.msra.mxu0 0.0
        %735 = vmatprep.subr.mxu0 0.0
        %736 = vmatpush1.msra.mxu0 0.0
        %737 = vmatprep.subr.mxu0 0.0
        %738 = vmatpush1.msra.mxu0 0.0
        %739 = vmatprep.subr.mxu0 0.0
        %740 = vmatpush1.msra.mxu0 0.0
        %741 = vmatprep.subr.mxu0 0.0
        %742 = vmatpush1.msra.mxu0 0.0
        %743 = vmatprep.subr.mxu0 0.0
        %744 = vmatpush1.msra.mxu0 0.0
        %745 = vmatprep.subr.mxu0 0.0
        %746 = vmatpush1.msra.mxu0 0.0
        %747 = vmatprep.subr.mxu0 0.0
        %748 = vmatpush1.msra.mxu0 0.0
        %749 = vmatprep.subr.mxu0 0.0
        %750 = vmatpush1.msra.mxu0 0.0
        %751 = vmatprep.subr.mxu0 0.0
        %752 = vmatpush1.msra.mxu0 0.0
        %753 = vmatprep.subr.mxu0 0.0
        %754 = vmatpush1.msra.mxu0 0.0
        %755 = vmatprep.subr.mxu0 0.0
        %756 = vmatpush1.msra.mxu0 0.0
        %757 = vmatprep.subr.mxu0 0.0
        %758 = vmatpush1.msra.mxu0 0.0
        %759 = vmatprep.subr.mxu0 0.0
        %760 = vmatpush1.msra.mxu0 0.0
        %761 = vmatprep.subr.mxu0 0.0
        %762 = vmatpush1.msra.mxu0 0.0
        %763 = vmatprep.subr.mxu0 0.0
        %764 = vmatpush1.msra.mxu0 0.0
        %765 = vmatprep.subr.mxu0 0.0
        %766 = vmatpush1.msra.mxu0 0.0
        %767 = vmatprep.subr.mxu0 0.0
        %768 = vmatpush1.msra.mxu0 0.0
        %769 = vmatprep.subr.mxu0 0.0
        %770 = vmatpush1.msra.mxu0 0.0
        %771 = vmatprep.subr.mxu0 0.0
        %772 = vmatpush1.msra.mxu0 0.0
        %773 = vmatprep.subr.mxu0 0.0
        %774 = vmatpush1.msra.mxu0 0.0
        %775 = vmatprep.subr.mxu0 0.0
        %776 = vmatpush1.msra.mxu0 0.0
        %777 = vmatprep.subr.mxu0 0.0
        %778 = vmatpush1.msra.mxu0 0.0
        %779 = vmatprep.subr.mxu0 0.0
        %780 = vmatpush1.msra.mxu0 0.0
        %781 = vmatprep.subr.mxu0 0.0
        %782 = vmatpush1.msra.mxu0 0.0
        %783 = vmatprep.subr.mxu0 0.0
        %784 = vmatpush1.msra.mxu0 0.0
        %785 = vmatprep.subr.mxu0 0.0
        %786 = vmatpush1.msra.mxu0 0.0
        %787 = vmatprep.mubr.f32.mxu0 0.0
        %788 = vmatmul.mubr.f32.gmra.mrb[0].mxu0 %v712
        %v789 = vpop.f32.mrb[0].mxu0
        %v790 = vadd.f32 %v709, %v789
        %v791 = vpop.f32.mrb[0].mxu0
        %792 = vmatprep.mubr.f32.mxu0 0.0
        %793 = vmatmul.mubr.f32.gmra.mrb[0].mxu0 %v715
        %v794 = vpop.f32.mrb[0].mxu0
        %v795 = vadd.f32 %v709, %v794
        %v796 = vpop.f32.mrb[0].mxu0
        %797 = vmatprep.mubr.f32.mxu0 0.0
        %798 = vmatmul.mubr.f32.gmra.mrb[0].mxu0 %v718
        %v799 = vpop.f32.mrb[0].mxu0
        %v800 = vadd.f32 %v709, %v799
        %v801 = vpop.f32.mrb[0].mxu0
        %802 = vmatprep.mubr.f32.mxu0 0.0
        %803 = vmatmul.mubr.f32.gmra.mrb[0].mxu0 %v721
        %v804 = vpop.f32.mrb[0].mxu0
        %v805 = vadd.f32 %v709, %v804
        %v806 = vpop.f32.mrb[0].mxu0
        %807 = vdwg.mxu0
        %v808 = vmax.f32 %v790, %v800
        %v809 = vmax.f32 %v795, %v805
        %810 = vst [vmem:[#allocation3] sm:$0xff] %v808
        %811 = vst [vmem:[#allocation3 + $0x8] sm:$0xff] %v809
        %v812 = vld [vmem:[#allocation3] ss:$2 sm:$0xff]
        %v813 = vld [vmem:[%s452] ss:$2 sm:$0xff]
        %v814 = vmax.f32 %v812, %v813
        %815 = vst [vmem:[#allocation2 + $0x18] sm:$0xff] %v814
        %v816 = vld [vmem:[%s319 + $0x80] sm:$0xff]
        %v817 = vld [vmem:[%s319 + $0x88] sm:$0xff]
        %v818 = vld [vmem:[%s319 + $0x90] sm:$0xff]
        %v819 = vld [vmem:[%s319 + $0x98] sm:$0xff]
        %v820 = vld [vmem:[%s3] sm:$0xff]
        %v821 = vld [vmem:[%s3 + $0x8] sm:$0xff]
        %v822 = vld [vmem:[%s3 + $0x10] sm:$0xff]
        %v823 = vld [vmem:[%s3 + $0x18] sm:$0xff]
        %v824 = vld [vmem:[%s4] sm:$0x1]
        %v826 = vlaneseq
        %v827 = vshrl.u32 %v826, 7
        %v828 = vsub.s32 0, %v827
        %v829 = vrot.slane %v824, %v828
        %v832 = vsel %vm349, %v816, 0
        %v835 = vsel %vm349, %v817, 0
        %v838 = vsel %vm349, %v818, 0
        %v841 = vsel %vm349, %v819, 0
        %843 = vmatprep.subr.mxu0 0.0
        %844 = vmatpush1.msra.mxu0 %v820
        %845 = vmatprep.subr.mxu0 0.0
        %846 = vmatpush1.msra.mxu0 %v821
        %847 = vmatprep.subr.mxu0 0.0
        %848 = vmatpush1.msra.mxu0 %v822
        %849 = vmatprep.subr.mxu0 0.0
        %850 = vmatpush1.msra.mxu0 %v823
        %851 = vmatprep.subr.mxu0 0.0
        %852 = vmatpush1.msra.mxu0 0.0
        %853 = vmatprep.subr.mxu0 0.0
        %854 = vmatpush1.msra.mxu0 0.0
        %855 = vmatprep.subr.mxu0 0.0
        %856 = vmatpush1.msra.mxu0 0.0
        %857 = vmatprep.subr.mxu0 0.0
        %858 = vmatpush1.msra.mxu0 0.0
        %859 = vmatprep.subr.mxu0 0.0
        %860 = vmatpush1.msra.mxu0 0.0
        %861 = vmatprep.subr.mxu0 0.0
        %862 = vmatpush1.msra.mxu0 0.0
        %863 = vmatprep.subr.mxu0 0.0
        %864 = vmatpush1.msra.mxu0 0.0
        %865 = vmatprep.subr.mxu0 0.0
        %866 = vmatpush1.msra.mxu0 0.0
        %867 = vmatprep.subr.mxu0 0.0
        %868 = vmatpush1.msra.mxu0 0.0
        %869 = vmatprep.subr.mxu0 0.0
        %870 = vmatpush1.msra.mxu0 0.0
        %871 = vmatprep.subr.mxu0 0.0
        %872 = vmatpush1.msra.mxu0 0.0
        %873 = vmatprep.subr.mxu0 0.0
        %874 = vmatpush1.msra.mxu0 0.0
        %875 = vmatprep.subr.mxu0 0.0
        %876 = vmatpush1.msra.mxu0 0.0
        %877 = vmatprep.subr.mxu0 0.0
        %878 = vmatpush1.msra.mxu0 0.0
        %879 = vmatprep.subr.mxu0 0.0
        %880 = vmatpush1.msra.mxu0 0.0
        %881 = vmatprep.subr.mxu0 0.0
        %882 = vmatpush1.msra.mxu0 0.0
        %883 = vmatprep.subr.mxu0 0.0
        %884 = vmatpush1.msra.mxu0 0.0
        %885 = vmatprep.subr.mxu0 0.0
        %886 = vmatpush1.msra.mxu0 0.0
        %887 = vmatprep.subr.mxu0 0.0
        %888 = vmatpush1.msra.mxu0 0.0
        %889 = vmatprep.subr.mxu0 0.0
        %890 = vmatpush1.msra.mxu0 0.0
        %891 = vmatprep.subr.mxu0 0.0
        %892 = vmatpush1.msra.mxu0 0.0
        %893 = vmatprep.subr.mxu0 0.0
        %894 = vmatpush1.msra.mxu0 0.0
        %895 = vmatprep.subr.mxu0 0.0
        %896 = vmatpush1.msra.mxu0 0.0
        %897 = vmatprep.subr.mxu0 0.0
        %898 = vmatpush1.msra.mxu0 0.0
        %899 = vmatprep.subr.mxu0 0.0
        %900 = vmatpush1.msra.mxu0 0.0
        %901 = vmatprep.subr.mxu0 0.0
        %902 = vmatpush1.msra.mxu0 0.0
        %903 = vmatprep.subr.mxu0 0.0
        %904 = vmatpush1.msra.mxu0 0.0
        %905 = vmatprep.subr.mxu0 0.0
        %906 = vmatpush1.msra.mxu0 0.0
        %907 = vmatprep.mubr.f32.mxu0 0.0
        %908 = vmatmul.mubr.f32.gmra.mrb[0].mxu0 %v832
        %v909 = vpop.f32.mrb[0].mxu0
        %v910 = vadd.f32 %v829, %v909
        %v911 = vpop.f32.mrb[0].mxu0
        %912 = vmatprep.mubr.f32.mxu0 0.0
        %913 = vmatmul.mubr.f32.gmra.mrb[0].mxu0 %v835
        %v914 = vpop.f32.mrb[0].mxu0
        %v915 = vadd.f32 %v829, %v914
        %v916 = vpop.f32.mrb[0].mxu0
        %917 = vmatprep.mubr.f32.mxu0 0.0
        %918 = vmatmul.mubr.f32.gmra.mrb[0].mxu0 %v838
        %v919 = vpop.f32.mrb[0].mxu0
        %v920 = vadd.f32 %v829, %v919
        %v921 = vpop.f32.mrb[0].mxu0
        %922 = vmatprep.mubr.f32.mxu0 0.0
        %923 = vmatmul.mubr.f32.gmra.mrb[0].mxu0 %v841
        %v924 = vpop.f32.mrb[0].mxu0
        %v925 = vadd.f32 %v829, %v924
        %v926 = vpop.f32.mrb[0].mxu0
        %927 = vdwg.mxu0
        %v928 = vmax.f32 %v910, %v920
        %v929 = vmax.f32 %v915, %v925
        %930 = vst [vmem:[#allocation3] sm:$0xff] %v928
        %931 = vst [vmem:[#allocation3 + $0x8] sm:$0xff] %v929
        %v932 = vld [vmem:[#allocation3] ss:$2 sm:$0xff]
        %v933 = vld [vmem:[%s452] ss:$2 sm:$0xff]
        %v934 = vmax.f32 %v932, %v933
        %935 = vst [vmem:[#allocation2 + $0x20] sm:$0xff] %v934
        %v936 = vld [vmem:[%s319 + $0xa0] sm:$0xff]
        %v937 = vld [vmem:[%s319 + $0xa8] sm:$0xff]
        %v938 = vld [vmem:[%s319 + $0xb0] sm:$0xff]
        %v939 = vld [vmem:[%s319 + $0xb8] sm:$0xff]
        %v940 = vld [vmem:[%s3] sm:$0xff]
        %v941 = vld [vmem:[%s3 + $0x8] sm:$0xff]
        %v942 = vld [vmem:[%s3 + $0x10] sm:$0xff]
        %v943 = vld [vmem:[%s3 + $0x18] sm:$0xff]
        %v944 = vld [vmem:[%s4] sm:$0x1]
        %v946 = vlaneseq
        %v947 = vshrl.u32 %v946, 7
        %v948 = vsub.s32 0, %v947
        %v949 = vrot.slane %v944, %v948
        %v952 = vsel %vm349, %v936, 0
        %v955 = vsel %vm349, %v937, 0
        %v958 = vsel %vm349, %v938, 0
        %v961 = vsel %vm349, %v939, 0
        %963 = vmatprep.subr.mxu0 0.0
        %964 = vmatpush1.msra.mxu0 %v940
        %965 = vmatprep.subr.mxu0 0.0
        %966 = vmatpush1.msra.mxu0 %v941
        %967 = vmatprep.subr.mxu0 0.0
        %968 = vmatpush1.msra.mxu0 %v942
        %969 = vmatprep.subr.mxu0 0.0
        %970 = vmatpush1.msra.mxu0 %v943
        %971 = vmatprep.subr.mxu0 0.0
        %972 = vmatpush1.msra.mxu0 0.0
        %973 = vmatprep.subr.mxu0 0.0
        %974 = vmatpush1.msra.mxu0 0.0
        %975 = vmatprep.subr.mxu0 0.0
        %976 = vmatpush1.msra.mxu0 0.0
        %977 = vmatprep.subr.mxu0 0.0
        %978 = vmatpush1.msra.mxu0 0.0
        %979 = vmatprep.subr.mxu0 0.0
        %980 = vmatpush1.msra.mxu0 0.0
        %981 = vmatprep.subr.mxu0 0.0
        %982 = vmatpush1.msra.mxu0 0.0
        %983 = vmatprep.subr.mxu0 0.0
        %984 = vmatpush1.msra.mxu0 0.0
        %985 = vmatprep.subr.mxu0 0.0
        %986 = vmatpush1.msra.mxu0 0.0
        %987 = vmatprep.subr.mxu0 0.0
        %988 = vmatpush1.msra.mxu0 0.0
        %989 = vmatprep.subr.mxu0 0.0
        %990 = vmatpush1.msra.mxu0 0.0
        %991 = vmatprep.subr.mxu0 0.0
        %992 = vmatpush1.msra.mxu0 0.0
        %993 = vmatprep.subr.mxu0 0.0
        %994 = vmatpush1.msra.mxu0 0.0
        %995 = vmatprep.subr.mxu0 0.0
        %996 = vmatpush1.msra.mxu0 0.0
        %997 = vmatprep.subr.mxu0 0.0
        %998 = vmatpush1.msra.mxu0 0.0
        %999 = vmatprep.subr.mxu0 0.0
        %1000 = vmatpush1.msra.mxu0 0.0
        %1001 = vmatprep.subr.mxu0 0.0
        %1002 = vmatpush1.msra.mxu0 0.0
        %1003 = vmatprep.subr.mxu0 0.0
        %1004 = vmatpush1.msra.mxu0 0.0
        %1005 = vmatprep.subr.mxu0 0.0
        %1006 = vmatpush1.msra.mxu0 0.0
        %1007 = vmatprep.subr.mxu0 0.0
        %1008 = vmatpush1.msra.mxu0 0.0
        %1009 = vmatprep.subr.mxu0 0.0
        %1010 = vmatpush1.msra.mxu0 0.0
        %1011 = vmatprep.subr.mxu0 0.0
        %1012 = vmatpush1.msra.mxu0 0.0
        %1013 = vmatprep.subr.mxu0 0.0
        %1014 = vmatpush1.msra.mxu0 0.0
        %1015 = vmatprep.subr.mxu0 0.0
        %1016 = vmatpush1.msra.mxu0 0.0
        %1017 = vmatprep.subr.mxu0 0.0
        %1018 = vmatpush1.msra.mxu0 0.0
        %1019 = vmatprep.subr.mxu0 0.0
        %1020 = vmatpush1.msra.mxu0 0.0
        %1021 = vmatprep.subr.mxu0 0.0
        %1022 = vmatpush1.msra.mxu0 0.0
        %1023 = vmatprep.subr.mxu0 0.0
        %1024 = vmatpush1.msra.mxu0 0.0
        %1025 = vmatprep.subr.mxu0 0.0
        %1026 = vmatpush1.msra.mxu0 0.0
        %1027 = vmatprep.mubr.f32.mxu0 0.0
        %1028 = vmatmul.mubr.f32.gmra.mrb[0].mxu0 %v952
        %v1029 = vpop.f32.mrb[0].mxu0
        %v1030 = vadd.f32 %v949, %v1029
        %v1031 = vpop.f32.mrb[0].mxu0
        %1032 = vmatprep.mubr.f32.mxu0 0.0
        %1033 = vmatmul.mubr.f32.gmra.mrb[0].mxu0 %v955
        %v1034 = vpop.f32.mrb[0].mxu0
        %v1035 = vadd.f32 %v949, %v1034
        %v1036 = vpop.f32.mrb[0].mxu0
        %1037 = vmatprep.mubr.f32.mxu0 0.0
        %1038 = vmatmul.mubr.f32.gmra.mrb[0].mxu0 %v958
        %v1039 = vpop.f32.mrb[0].mxu0
        %v1040 = vadd.f32 %v949, %v1039
        %v1041 = vpop.f32.mrb[0].mxu0
        %1042 = vmatprep.mubr.f32.mxu0 0.0
        %1043 = vmatmul.mubr.f32.gmra.mrb[0].mxu0 %v961
        %v1044 = vpop.f32.mrb[0].mxu0
        %v1045 = vadd.f32 %v949, %v1044
        %v1046 = vpop.f32.mrb[0].mxu0
        %1047 = vdwg.mxu0
        %v1048 = vmax.f32 %v1030, %v1040
        %v1049 = vmax.f32 %v1035, %v1045
        %1050 = vst [vmem:[#allocation3] sm:$0xff] %v1048
        %1051 = vst [vmem:[#allocation3 + $0x8] sm:$0xff] %v1049
        %v1052 = vld [vmem:[#allocation3] ss:$2 sm:$0xff]
        %v1053 = vld [vmem:[%s452] ss:$2 sm:$0xff]
        %v1054 = vmax.f32 %v1052, %v1053
        %1055 = vst [vmem:[#allocation2 + $0x28] sm:$0xff] %v1054
        %v1056 = vld [vmem:[%s319 + $0xc0] sm:$0xff]
        %v1057 = vld [vmem:[%s319 + $0xc8] sm:$0xff]
        %v1058 = vld [vmem:[%s319 + $0xd0] sm:$0xff]
        %v1059 = vld [vmem:[%s319 + $0xd8] sm:$0xff]
        %v1060 = vld [vmem:[%s3] sm:$0xff]
        %v1061 = vld [vmem:[%s3 + $0x8] sm:$0xff]
        %v1062 = vld [vmem:[%s3 + $0x10] sm:$0xff]
        %v1063 = vld [vmem:[%s3 + $0x18] sm:$0xff]
        %v1064 = vld [vmem:[%s4] sm:$0x1]
        %v1066 = vlaneseq
        %v1067 = vshrl.u32 %v1066, 7
        %v1068 = vsub.s32 0, %v1067
        %v1069 = vrot.slane %v1064, %v1068
        %v1072 = vsel %vm349, %v1056, 0
        %v1075 = vsel %vm349, %v1057, 0
        %v1078 = vsel %vm349, %v1058, 0
        %v1081 = vsel %vm349, %v1059, 0
        %1083 = vmatprep.subr.mxu0 0.0
        %1084 = vmatpush1.msra.mxu0 %v1060
        %1085 = vmatprep.subr.mxu0 0.0
        %1086 = vmatpush1.msra.mxu0 %v1061
        %1087 = vmatprep.subr.mxu0 0.0
        %1088 = vmatpush1.msra.mxu0 %v1062
        %1089 = vmatprep.subr.mxu0 0.0
        %1090 = vmatpush1.msra.mxu0 %v1063
        %1091 = vmatprep.subr.mxu0 0.0
        %1092 = vmatpush1.msra.mxu0 0.0
        %1093 = vmatprep.subr.mxu0 0.0
        %1094 = vmatpush1.msra.mxu0 0.0
        %1095 = vmatprep.subr.mxu0 0.0
        %1096 = vmatpush1.msra.mxu0 0.0
        %1097 = vmatprep.subr.mxu0 0.0
        %1098 = vmatpush1.msra.mxu0 0.0
        %1099 = vmatprep.subr.mxu0 0.0
        %1100 = vmatpush1.msra.mxu0 0.0
        %1101 = vmatprep.subr.mxu0 0.0
        %1102 = vmatpush1.msra.mxu0 0.0
        %1103 = vmatprep.subr.mxu0 0.0
        %1104 = vmatpush1.msra.mxu0 0.0
        %1105 = vmatprep.subr.mxu0 0.0
        %1106 = vmatpush1.msra.mxu0 0.0
        %1107 = vmatprep.subr.mxu0 0.0
        %1108 = vmatpush1.msra.mxu0 0.0
        %1109 = vmatprep.subr.mxu0 0.0
        %1110 = vmatpush1.msra.mxu0 0.0
        %1111 = vmatprep.subr.mxu0 0.0
        %1112 = vmatpush1.msra.mxu0 0.0
        %1113 = vmatprep.subr.mxu0 0.0
        %1114 = vmatpush1.msra.mxu0 0.0
        %1115 = vmatprep.subr.mxu0 0.0
        %1116 = vmatpush1.msra.mxu0 0.0
        %1117 = vmatprep.subr.mxu0 0.0
        %1118 = vmatpush1.msra.mxu0 0.0
        %1119 = vmatprep.subr.mxu0 0.0
        %1120 = vmatpush1.msra.mxu0 0.0
        %1121 = vmatprep.subr.mxu0 0.0
        %1122 = vmatpush1.msra.mxu0 0.0
        %1123 = vmatprep.subr.mxu0 0.0
        %1124 = vmatpush1.msra.mxu0 0.0
        %1125 = vmatprep.subr.mxu0 0.0
        %1126 = vmatpush1.msra.mxu0 0.0
        %1127 = vmatprep.subr.mxu0 0.0
        %1128 = vmatpush1.msra.mxu0 0.0
        %1129 = vmatprep.subr.mxu0 0.0
        %1130 = vmatpush1.msra.mxu0 0.0
        %1131 = vmatprep.subr.mxu0 0.0
        %1132 = vmatpush1.msra.mxu0 0.0
        %1133 = vmatprep.subr.mxu0 0.0
        %1134 = vmatpush1.msra.mxu0 0.0
        %1135 = vmatprep.subr.mxu0 0.0
        %1136 = vmatpush1.msra.mxu0 0.0
        %1137 = vmatprep.subr.mxu0 0.0
        %1138 = vmatpush1.msra.mxu0 0.0
        %1139 = vmatprep.subr.mxu0 0.0
        %1140 = vmatpush1.msra.mxu0 0.0
        %1141 = vmatprep.subr.mxu0 0.0
        %1142 = vmatpush1.msra.mxu0 0.0
        %1143 = vmatprep.subr.mxu0 0.0
        %1144 = vmatpush1.msra.mxu0 0.0
        %1145 = vmatprep.subr.mxu0 0.0
        %1146 = vmatpush1.msra.mxu0 0.0
        %1147 = vmatprep.mubr.f32.mxu0 0.0
        %1148 = vmatmul.mubr.f32.gmra.mrb[0].mxu0 %v1072
        %v1149 = vpop.f32.mrb[0].mxu0
        %v1150 = vadd.f32 %v1069, %v1149
        %v1151 = vpop.f32.mrb[0].mxu0
        %1152 = vmatprep.mubr.f32.mxu0 0.0
        %1153 = vmatmul.mubr.f32.gmra.mrb[0].mxu0 %v1075
        %v1154 = vpop.f32.mrb[0].mxu0
        %v1155 = vadd.f32 %v1069, %v1154
        %v1156 = vpop.f32.mrb[0].mxu0
        %1157 = vmatprep.mubr.f32.mxu0 0.0
        %1158 = vmatmul.mubr.f32.gmra.mrb[0].mxu0 %v1078
        %v1159 = vpop.f32.mrb[0].mxu0
        %v1160 = vadd.f32 %v1069, %v1159
        %v1161 = vpop.f32.mrb[0].mxu0
        %1162 = vmatprep.mubr.f32.mxu0 0.0
        %1163 = vmatmul.mubr.f32.gmra.mrb[0].mxu0 %v1081
        %v1164 = vpop.f32.mrb[0].mxu0
        %v1165 = vadd.f32 %v1069, %v1164
        %v1166 = vpop.f32.mrb[0].mxu0
        %1167 = vdwg.mxu0
        %v1168 = vmax.f32 %v1150, %v1160
        %v1169 = vmax.f32 %v1155, %v1165
        %1170 = vst [vmem:[#allocation3] sm:$0xff] %v1168
        %1171 = vst [vmem:[#allocation3 + $0x8] sm:$0xff] %v1169
        %v1172 = vld [vmem:[#allocation3] ss:$2 sm:$0xff]
        %v1173 = vld [vmem:[%s452] ss:$2 sm:$0xff]
        %v1174 = vmax.f32 %v1172, %v1173
        %1175 = vst [vmem:[#allocation2 + $0x30] sm:$0xff] %v1174
        %v1176 = vld [vmem:[%s319 + $0xe0] sm:$0xff]
        %v1177 = vld [vmem:[%s319 + $0xe8] sm:$0xff]
        %v1178 = vld [vmem:[%s319 + $0xf0] sm:$0xff]
        %v1179 = vld [vmem:[%s319 + $0xf8] sm:$0xff]
        %v1180 = vld [vmem:[%s3] sm:$0xff]
        %v1181 = vld [vmem:[%s3 + $0x8] sm:$0xff]
        %v1182 = vld [vmem:[%s3 + $0x10] sm:$0xff]
        %v1183 = vld [vmem:[%s3 + $0x18] sm:$0xff]
        %v1184 = vld [vmem:[%s4] sm:$0x1]
        %v1186 = vlaneseq
        %v1187 = vshrl.u32 %v1186, 7
        %v1188 = vsub.s32 0, %v1187
        %v1189 = vrot.slane %v1184, %v1188
        %v1192 = vsel %vm349, %v1176, 0
        %v1195 = vsel %vm349, %v1177, 0
        %v1198 = vsel %vm349, %v1178, 0
        %v1201 = vsel %vm349, %v1179, 0
        %1203 = vmatprep.subr.mxu0 0.0
        %1204 = vmatpush1.msra.mxu0 %v1180
        %1205 = vmatprep.subr.mxu0 0.0
        %1206 = vmatpush1.msra.mxu0 %v1181
        %1207 = vmatprep.subr.mxu0 0.0
        %1208 = vmatpush1.msra.mxu0 %v1182
        %1209 = vmatprep.subr.mxu0 0.0
        %1210 = vmatpush1.msra.mxu0 %v1183
        %1211 = vmatprep.subr.mxu0 0.0
        %1212 = vmatpush1.msra.mxu0 0.0
        %1213 = vmatprep.subr.mxu0 0.0
        %1214 = vmatpush1.msra.mxu0 0.0
        %1215 = vmatprep.subr.mxu0 0.0
        %1216 = vmatpush1.msra.mxu0 0.0
        %1217 = vmatprep.subr.mxu0 0.0
        %1218 = vmatpush1.msra.mxu0 0.0
        %1219 = vmatprep.subr.mxu0 0.0
        %1220 = vmatpush1.msra.mxu0 0.0
        %1221 = vmatprep.subr.mxu0 0.0
        %1222 = vmatpush1.msra.mxu0 0.0
        %1223 = vmatprep.subr.mxu0 0.0
        %1224 = vmatpush1.msra.mxu0 0.0
        %1225 = vmatprep.subr.mxu0 0.0
        %1226 = vmatpush1.msra.mxu0 0.0
        %1227 = vmatprep.subr.mxu0 0.0
        %1228 = vmatpush1.msra.mxu0 0.0
        %1229 = vmatprep.subr.mxu0 0.0
        %1230 = vmatpush1.msra.mxu0 0.0
        %1231 = vmatprep.subr.mxu0 0.0
        %1232 = vmatpush1.msra.mxu0 0.0
        %1233 = vmatprep.subr.mxu0 0.0
        %1234 = vmatpush1.msra.mxu0 0.0
        %1235 = vmatprep.subr.mxu0 0.0
        %1236 = vmatpush1.msra.mxu0 0.0
        %1237 = vmatprep.subr.mxu0 0.0
        %1238 = vmatpush1.msra.mxu0 0.0
        %1239 = vmatprep.subr.mxu0 0.0
        %1240 = vmatpush1.msra.mxu0 0.0
        %1241 = vmatprep.subr.mxu0 0.0
        %1242 = vmatpush1.msra.mxu0 0.0
        %1243 = vmatprep.subr.mxu0 0.0
        %1244 = vmatpush1.msra.mxu0 0.0
        %1245 = vmatprep.subr.mxu0 0.0
        %1246 = vmatpush1.msra.mxu0 0.0
        %1247 = vmatprep.subr.mxu0 0.0
        %1248 = vmatpush1.msra.mxu0 0.0
        %1249 = vmatprep.subr.mxu0 0.0
        %1250 = vmatpush1.msra.mxu0 0.0
        %1251 = vmatprep.subr.mxu0 0.0
        %1252 = vmatpush1.msra.mxu0 0.0
        %1253 = vmatprep.subr.mxu0 0.0
        %1254 = vmatpush1.msra.mxu0 0.0
        %1255 = vmatprep.subr.mxu0 0.0
        %1256 = vmatpush1.msra.mxu0 0.0
        %1257 = vmatprep.subr.mxu0 0.0
        %1258 = vmatpush1.msra.mxu0 0.0
        %1259 = vmatprep.subr.mxu0 0.0
        %1260 = vmatpush1.msra.mxu0 0.0
        %1261 = vmatprep.subr.mxu0 0.0
        %1262 = vmatpush1.msra.mxu0 0.0
        %1263 = vmatprep.subr.mxu0 0.0
        %1264 = vmatpush1.msra.mxu0 0.0
        %1265 = vmatprep.subr.mxu0 0.0
        %1266 = vmatpush1.msra.mxu0 0.0
        %1267 = vmatprep.mubr.f32.mxu0 0.0
        %1268 = vmatmul.mubr.f32.gmra.mrb[0].mxu0 %v1192
        %v1269 = vpop.f32.mrb[0].mxu0
        %v1270 = vadd.f32 %v1189, %v1269
        %v1271 = vpop.f32.mrb[0].mxu0
        %1272 = vmatprep.mubr.f32.mxu0 0.0
        %1273 = vmatmul.mubr.f32.gmra.mrb[0].mxu0 %v1195
        %v1274 = vpop.f32.mrb[0].mxu0
        %v1275 = vadd.f32 %v1189, %v1274
        %v1276 = vpop.f32.mrb[0].mxu0
        %1277 = vmatprep.mubr.f32.mxu0 0.0
        %1278 = vmatmul.mubr.f32.gmra.mrb[0].mxu0 %v1198
        %v1279 = vpop.f32.mrb[0].mxu0
        %v1280 = vadd.f32 %v1189, %v1279
        %v1281 = vpop.f32.mrb[0].mxu0
        %1282 = vmatprep.mubr.f32.mxu0 0.0
        %1283 = vmatmul.mubr.f32.gmra.mrb[0].mxu0 %v1201
        %v1284 = vpop.f32.mrb[0].mxu0
        %v1285 = vadd.f32 %v1189, %v1284
        %v1286 = vpop.f32.mrb[0].mxu0
        %1287 = vdwg.mxu0
        %v1288 = vmax.f32 %v1270, %v1280
        %v1289 = vmax.f32 %v1275, %v1285
        %1290 = vst [vmem:[#allocation3] sm:$0xff] %v1288
        %1291 = vst [vmem:[#allocation3 + $0x8] sm:$0xff] %v1289
        %v1292 = vld [vmem:[#allocation3] ss:$2 sm:$0xff]
        %v1293 = vld [vmem:[%s452] ss:$2 sm:$0xff]
        %v1294 = vmax.f32 %v1292, %v1293
        %1295 = vst [vmem:[#allocation2 + $0x38] sm:$0xff] %v1294
        %v1296 = vld [vmem:[#allocation2] sm:$0xff]
        %v1297 = vld [vmem:[#allocation2 + $0x8] sm:$0xff]
        %v1298 = vld [vmem:[#allocation2 + $0x10] sm:$0xff]
        %v1299 = vld [vmem:[#allocation2 + $0x18] sm:$0xff]
        %v1300 = vld [vmem:[#allocation2 + $0x20] sm:$0xff]
        %v1301 = vld [vmem:[#allocation2 + $0x28] sm:$0xff]
        %v1302 = vld [vmem:[#allocation2 + $0x30] sm:$0xff]
        %v1303 = vld [vmem:[#allocation2 + $0x38] sm:$0xff]
        %v1304 = vlaneseq
        %v1305 = vshrl.u32 %v1304, 7
        %v1306 = vlaneseq
        %v1307 = vand.u32 %v1306, 127
        %vm1308 = vcmp.eq.s32.totalorder %v1305, %v1307
        %v1309 = vsel %vm1308, 1, 0
        %v1310 = vcvt.s32.f32 %v1309
        %vm1311 = vcmask 64512
        %v1313 = vsel %vm1311, %v1310, 0
        %v1316 = vsel %vm1311, %v1296, 0
        %v1319 = vsel %vm1311, %v1297, 0
        %v1322 = vsel %vm1311, %v1298, 0
        %v1325 = vsel %vm1311, %v1299, 0
        %v1328 = vsel %vm1311, %v1300, 0
        %v1331 = vsel %vm1311, %v1301, 0
        %v1334 = vsel %vm1311, %v1302, 0
        %v1337 = vsel %vm1311, %v1303, 0
        %1339 = vmatprep.subr.mxu0 0.0
        %1340 = vmatpush1.xpose.msra.mxu0 %v1316
        %1341 = vmatprep.subr.mxu0 0.0
        %1342 = vmatpush1.xpose.msra.mxu0 %v1319
        %1343 = vmatprep.subr.mxu0 0.0
        %1344 = vmatpush1.xpose.msra.mxu0 %v1322
        %1345 = vmatprep.subr.mxu0 0.0
        %1346 = vmatpush1.xpose.msra.mxu0 %v1325
        %1347 = vmatprep.subr.mxu0 0.0
        %1348 = vmatpush1.xpose.msra.mxu0 %v1328
        %1349 = vmatprep.subr.mxu0 0.0
        %1350 = vmatpush1.xpose.msra.mxu0 %v1331
        %1351 = vmatprep.subr.mxu0 0.0
        %1352 = vmatpush1.xpose.msra.mxu0 %v1334
        %1353 = vmatprep.subr.mxu0 0.0
        %1354 = vmatpush1.xpose.msra.mxu0 %v1337
        %1355 = vmatprep.subr.mxu0 0.0
        %1356 = vmatpush1.xpose.msra.mxu0 0.0
        %1357 = vmatprep.subr.mxu0 0.0
        %1358 = vmatpush1.xpose.msra.mxu0 0.0
        %1359 = vmatprep.subr.mxu0 0.0
        %1360 = vmatpush1.xpose.msra.mxu0 0.0
        %1361 = vmatprep.subr.mxu0 0.0
        %1362 = vmatpush1.xpose.msra.mxu0 0.0
        %1363 = vmatprep.subr.mxu0 0.0
        %1364 = vmatpush1.xpose.msra.mxu0 0.0
        %1365 = vmatprep.subr.mxu0 0.0
        %1366 = vmatpush1.xpose.msra.mxu0 0.0
        %1367 = vmatprep.subr.mxu0 0.0
        %1368 = vmatpush1.xpose.msra.mxu0 0.0
        %1369 = vmatprep.subr.mxu0 0.0
        %1370 = vmatpush1.xpose.msra.mxu0 0.0
        %1371 = vmatprep.subr.mxu0 0.0
        %1372 = vmatpush1.xpose.msra.mxu0 0.0
        %1373 = vmatprep.subr.mxu0 0.0
        %1374 = vmatpush1.xpose.msra.mxu0 0.0
        %1375 = vmatprep.subr.mxu0 0.0
        %1376 = vmatpush1.xpose.msra.mxu0 0.0
        %1377 = vmatprep.subr.mxu0 0.0
        %1378 = vmatpush1.xpose.msra.mxu0 0.0
        %1379 = vmatprep.subr.mxu0 0.0
        %1380 = vmatpush1.xpose.msra.mxu0 0.0
        %1381 = vmatprep.subr.mxu0 0.0
        %1382 = vmatpush1.xpose.msra.mxu0 0.0
        %1383 = vmatprep.subr.mxu0 0.0
        %1384 = vmatpush1.xpose.msra.mxu0 0.0
        %1385 = vmatprep.subr.mxu0 0.0
        %1386 = vmatpush1.xpose.msra.mxu0 0.0
        %1387 = vmatprep.subr.mxu0 0.0
        %1388 = vmatpush1.xpose.msra.mxu0 0.0
        %1389 = vmatprep.subr.mxu0 0.0
        %1390 = vmatpush1.xpose.msra.mxu0 0.0
        %1391 = vmatprep.subr.mxu0 0.0
        %1392 = vmatpush1.xpose.msra.mxu0 0.0
        %1393 = vmatprep.subr.mxu0 0.0
        %1394 = vmatpush1.xpose.msra.mxu0 0.0
        %1395 = vmatprep.subr.mxu0 0.0
        %1396 = vmatpush1.xpose.msra.mxu0 0.0
        %1397 = vmatprep.subr.mxu0 0.0
        %1398 = vmatpush1.xpose.msra.mxu0 0.0
        %1399 = vmatprep.subr.mxu0 0.0
        %1400 = vmatpush1.xpose.msra.mxu0 0.0
        %1401 = vmatprep.subr.mxu0 0.0
        %1402 = vmatpush1.xpose.msra.mxu0 0.0
        %1403 = vmatprep.mubr.f32.mxu0 0.0
        %1404 = vmatmul.mubr.f32.gmra.mrb[0].mxu0 %v1313
        %v1405 = vpop.f32.mrb[0].mxu0
        %v1406 = vadd.f32 0.0, %v1405
        %v1407 = vpop.f32.mrb[0].mxu0
        %1408 = vdwg.mxu0
        %vm1409 = vcmask 523264
        %1410 = vst.msk [vmem:[#allocation4] sm:$0xff] %vm1409, %v1406
        %v1411 = vld [vmem:[#allocation2] sm:$0xff]
        %v1412 = vld [vmem:[#allocation2 + $0x8] sm:$0xff]
        %v1413 = vld [vmem:[#allocation2 + $0x10] sm:$0xff]
        %v1414 = vld [vmem:[#allocation2 + $0x18] sm:$0xff]
        %v1415 = vld [vmem:[#allocation2 + $0x20] sm:$0xff]
        %v1416 = vld [vmem:[#allocation2 + $0x28] sm:$0xff]
        %v1417 = vld [vmem:[#allocation2 + $0x30] sm:$0xff]
        %v1418 = vld [vmem:[#allocation2 + $0x38] sm:$0xff]
        %1427 = vrot.lane.b32.xlu0 %v1411, 120
        %v1428 = vpop.permute.xlu0 %1427
        %1429 = vrot.lane.b32.xlu0 %v1412, 120
        %v1430 = vpop.permute.xlu0 %1429
        %1431 = vrot.lane.b32.xlu0 %v1413, 120
        %v1432 = vpop.permute.xlu0 %1431
        %1433 = vrot.lane.b32.xlu0 %v1414, 120
        %v1434 = vpop.permute.xlu0 %1433
        %1435 = vrot.lane.b32.xlu0 %v1415, 120
        %v1436 = vpop.permute.xlu0 %1435
        %1437 = vrot.lane.b32.xlu0 %v1416, 120
        %v1438 = vpop.permute.xlu0 %1437
        %1439 = vrot.lane.b32.xlu0 %v1417, 120
        %v1440 = vpop.permute.xlu0 %1439
        %1441 = vrot.lane.b32.xlu0 %v1418, 120
        %v1442 = vpop.permute.xlu0 %1441
        %vm1451 = vcmask 130048
        %1452 = vst.msk [vmem:[#allocation5] sm:$0xff] %vm1451, %v1428
        %1453 = vst.msk [vmem:[#allocation5 + $0x8] sm:$0xff] %vm1451, %v1430
        %1454 = vst.msk [vmem:[#allocation5 + $0x10] sm:$0xff] %vm1451, %v1432
        %1455 = vst.msk [vmem:[#allocation5 + $0x18] sm:$0xff] %vm1451, %v1434
        %1456 = vst.msk [vmem:[#allocation5 + $0x20] sm:$0xff] %vm1451, %v1436
        %1457 = vst.msk [vmem:[#allocation5 + $0x28] sm:$0xff] %vm1451, %v1438
        %1458 = vst.msk [vmem:[#allocation5 + $0x30] sm:$0xff] %vm1451, %v1440
        %1459 = vst.msk [vmem:[#allocation5 + $0x38] sm:$0xff] %vm1451, %v1442
      $region56: #{tpu_custom_call.1} parent=51 // pred_fallthru
        _
      %s1460 = smul.u32 %s25, 128
      %s1461 = scalar_lea.vmem %s319, %s1460
      %v1462 = vld [vmem:[%s1461] sm:$0xff]
      %v1463 = vld [vmem:[%s1461 + $0x8] sm:$0xff]
      %v1464 = vld [vmem:[%s1461 + $0x10] sm:$0xff]
      %v1465 = vld [vmem:[%s1461 + $0x18] sm:$0xff]
      %v1466 = vld [vmem:[%s1461 + $0x20] sm:$0xff]
      %v1467 = vld [vmem:[%s1461 + $0x28] sm:$0xff]
      %v1468 = vld [vmem:[%s1461 + $0x30] sm:$0xff]
      %v1469 = vld [vmem:[%s1461 + $0x38] sm:$0xff]
      %v1470 = vld [vmem:[%s1461 + $0x40] sm:$0xff]
      %v1471 = vld [vmem:[%s1461 + $0x48] sm:$0xff]
      %v1472 = vld [vmem:[%s1461 + $0x50] sm:$0xff]
      %v1473 = vld [vmem:[%s1461 + $0x58] sm:$0xff]
      %v1474 = vld [vmem:[%s1461 + $0x60] sm:$0xff]
      %v1475 = vld [vmem:[%s1461 + $0x68] sm:$0xff]
      %v1476 = vld [vmem:[%s1461 + $0x70] sm:$0xff]
      %v1477 = vld [vmem:[%s1461 + $0x78] sm:$0xff]
      %v1478 = vld [vmem:[%s1] sm:$0xff]
      %v1479 = vld [vmem:[%s1 + $0x8] sm:$0xff]
      %v1480 = vld [vmem:[%s1 + $0x10] sm:$0xff]
      %v1481 = vld [vmem:[%s1 + $0x18] sm:$0xff]
      %v1482 = vld [vmem:[%s2] sm:$0x1]
      %v1484 = vlaneseq
      %v1485 = vshrl.u32 %v1484, 7
      %v1486 = vsub.s32 0, %v1485
      %v1487 = vrot.slane %v1482, %v1486
      %vm1489 = vcmask 261120
      %v1491 = vsel %vm1489, %v1462, 0
      %v1494 = vsel %vm1489, %v1463, 0
      %v1497 = vsel %vm1489, %v1464, 0
      %v1500 = vsel %vm1489, %v1465, 0
      %v1503 = vsel %vm1489, %v1466, 0
      %v1506 = vsel %vm1489, %v1467, 0
      %v1509 = vsel %vm1489, %v1468, 0
      %v1512 = vsel %vm1489, %v1469, 0
      %v1515 = vsel %vm1489, %v1470, 0
      %v1518 = vsel %vm1489, %v1471, 0
      %v1521 = vsel %vm1489, %v1472, 0
      %v1524 = vsel %vm1489, %v1473, 0
      %v1527 = vsel %vm1489, %v1474, 0
      %v1530 = vsel %vm1489, %v1475, 0
      %v1533 = vsel %vm1489, %v1476, 0
      %v1536 = vsel %vm1489, %v1477, 0
      %1538 = vmatprep.subr.mxu0 0.0
      %1539 = vmatpush1.msra.mxu0 %v1478
      %1540 = vmatprep.subr.mxu0 0.0
      %1541 = vmatpush1.msra.mxu0 %v1479
      %1542 = vmatprep.subr.mxu0 0.0
      %1543 = vmatpush1.msra.mxu0 %v1480
      %1544 = vmatprep.subr.mxu0 0.0
      %1545 = vmatpush1.msra.mxu0 %v1481
      %1546 = vmatprep.subr.mxu0 0.0
      %1547 = vmatpush1.msra.mxu0 0.0
      %1548 = vmatprep.subr.mxu0 0.0
      %1549 = vmatpush1.msra.mxu0 0.0
      %1550 = vmatprep.subr.mxu0 0.0
      %1551 = vmatpush1.msra.mxu0 0.0
      %1552 = vmatprep.subr.mxu0 0.0
      %1553 = vmatpush1.msra.mxu0 0.0
      %1554 = vmatprep.subr.mxu0 0.0
      %1555 = vmatpush1.msra.mxu0 0.0
      %1556 = vmatprep.subr.mxu0 0.0
      %1557 = vmatpush1.msra.mxu0 0.0
      %1558 = vmatprep.subr.mxu0 0.0
      %1559 = vmatpush1.msra.mxu0 0.0
      %1560 = vmatprep.subr.mxu0 0.0
      %1561 = vmatpush1.msra.mxu0 0.0
      %1562 = vmatprep.subr.mxu0 0.0
      %1563 = vmatpush1.msra.mxu0 0.0
      %1564 = vmatprep.subr.mxu0 0.0
      %1565 = vmatpush1.msra.mxu0 0.0
      %1566 = vmatprep.subr.mxu0 0.0
      %1567 = vmatpush1.msra.mxu0 0.0
      %1568 = vmatprep.subr.mxu0 0.0
      %1569 = vmatpush1.msra.mxu0 0.0
      %1570 = vmatprep.subr.mxu0 0.0
      %1571 = vmatpush1.msra.mxu0 0.0
      %1572 = vmatprep.subr.mxu0 0.0
      %1573 = vmatpush1.msra.mxu0 0.0
      %1574 = vmatprep.subr.mxu0 0.0
      %1575 = vmatpush1.msra.mxu0 0.0
      %1576 = vmatprep.subr.mxu0 0.0
      %1577 = vmatpush1.msra.mxu0 0.0
      %1578 = vmatprep.subr.mxu0 0.0
      %1579 = vmatpush1.msra.mxu0 0.0
      %1580 = vmatprep.subr.mxu0 0.0
      %1581 = vmatpush1.msra.mxu0 0.0
      %1582 = vmatprep.subr.mxu0 0.0
      %1583 = vmatpush1.msra.mxu0 0.0
      %1584 = vmatprep.subr.mxu0 0.0
      %1585 = vmatpush1.msra.mxu0 0.0
      %1586 = vmatprep.subr.mxu0 0.0
      %1587 = vmatpush1.msra.mxu0 0.0
      %1588 = vmatprep.subr.mxu0 0.0
      %1589 = vmatpush1.msra.mxu0 0.0
      %1590 = vmatprep.subr.mxu0 0.0
      %1591 = vmatpush1.msra.mxu0 0.0
      %1592 = vmatprep.subr.mxu0 0.0
      %1593 = vmatpush1.msra.mxu0 0.0
      %1594 = vmatprep.subr.mxu0 0.0
      %1595 = vmatpush1.msra.mxu0 0.0
      %1596 = vmatprep.subr.mxu0 0.0
      %1597 = vmatpush1.msra.mxu0 0.0
      %1598 = vmatprep.subr.mxu0 0.0
      %1599 = vmatpush1.msra.mxu0 0.0
      %1600 = vmatprep.subr.mxu0 0.0
      %1601 = vmatpush1.msra.mxu0 0.0
      %1602 = vmatprep.mubr.f32.mxu0 0.0
      %1603 = vmatmul.mubr.f32.gmra.mrb[0].mxu0 %v1491
      %v1604 = vpop.f32.mrb[0].mxu0
      %v1605 = vadd.f32 %v1487, %v1604
      %v1606 = vpop.f32.mrb[0].mxu0
      %1607 = vmatprep.mubr.f32.mxu0 0.0
      %1608 = vmatmul.mubr.f32.gmra.mrb[0].mxu0 %v1494
      %v1609 = vpop.f32.mrb[0].mxu0
      %v1610 = vadd.f32 %v1487, %v1609
      %v1611 = vpop.f32.mrb[0].mxu0
      %1612 = vmatprep.mubr.f32.mxu0 0.0
      %1613 = vmatmul.mubr.f32.gmra.mrb[0].mxu0 %v1497
      %v1614 = vpop.f32.mrb[0].mxu0
      %v1615 = vadd.f32 %v1487, %v1614
      %v1616 = vpop.f32.mrb[0].mxu0
      %1617 = vmatprep.mubr.f32.mxu0 0.0
      %1618 = vmatmul.mubr.f32.gmra.mrb[0].mxu0 %v1500
      %v1619 = vpop.f32.mrb[0].mxu0
      %v1620 = vadd.f32 %v1487, %v1619
      %v1621 = vpop.f32.mrb[0].mxu0
      %1622 = vmatprep.mubr.f32.mxu0 0.0
      %1623 = vmatmul.mubr.f32.gmra.mrb[0].mxu0 %v1503
      %v1624 = vpop.f32.mrb[0].mxu0
      %v1625 = vadd.f32 %v1487, %v1624
      %v1626 = vpop.f32.mrb[0].mxu0
      %1627 = vmatprep.mubr.f32.mxu0 0.0
      %1628 = vmatmul.mubr.f32.gmra.mrb[0].mxu0 %v1506
      %v1629 = vpop.f32.mrb[0].mxu0
      %v1630 = vadd.f32 %v1487, %v1629
      %v1631 = vpop.f32.mrb[0].mxu0
      %1632 = vmatprep.mubr.f32.mxu0 0.0
      %1633 = vmatmul.mubr.f32.gmra.mrb[0].mxu0 %v1509
      %v1634 = vpop.f32.mrb[0].mxu0
      %v1635 = vadd.f32 %v1487, %v1634
      %v1636 = vpop.f32.mrb[0].mxu0
      %1637 = vmatprep.mubr.f32.mxu0 0.0
      %1638 = vmatmul.mubr.f32.gmra.mrb[0].mxu0 %v1512
      %v1639 = vpop.f32.mrb[0].mxu0
      %v1640 = vadd.f32 %v1487, %v1639
      %v1641 = vpop.f32.mrb[0].mxu0
      %1642 = vmatprep.mubr.f32.mxu0 0.0
      %1643 = vmatmul.mubr.f32.gmra.mrb[0].mxu0 %v1515
      %v1644 = vpop.f32.mrb[0].mxu0
      %v1645 = vadd.f32 %v1487, %v1644
      %v1646 = vpop.f32.mrb[0].mxu0
      %1647 = vmatprep.mubr.f32.mxu0 0.0
      %1648 = vmatmul.mubr.f32.gmra.mrb[0].mxu0 %v1518
      %v1649 = vpop.f32.mrb[0].mxu0
      %v1650 = vadd.f32 %v1487, %v1649
      %v1651 = vpop.f32.mrb[0].mxu0
      %1652 = vmatprep.mubr.f32.mxu0 0.0
      %1653 = vmatmul.mubr.f32.gmra.mrb[0].mxu0 %v1521
      %v1654 = vpop.f32.mrb[0].mxu0
      %v1655 = vadd.f32 %v1487, %v1654
      %v1656 = vpop.f32.mrb[0].mxu0
      %1657 = vmatprep.mubr.f32.mxu0 0.0
      %1658 = vmatmul.mubr.f32.gmra.mrb[0].mxu0 %v1524
      %v1659 = vpop.f32.mrb[0].mxu0
      %v1660 = vadd.f32 %v1487, %v1659
      %v1661 = vpop.f32.mrb[0].mxu0
      %1662 = vmatprep.mubr.f32.mxu0 0.0
      %1663 = vmatmul.mubr.f32.gmra.mrb[0].mxu0 %v1527
      %v1664 = vpop.f32.mrb[0].mxu0
      %v1665 = vadd.f32 %v1487, %v1664
      %v1666 = vpop.f32.mrb[0].mxu0
      %1667 = vmatprep.mubr.f32.mxu0 0.0
      %1668 = vmatmul.mubr.f32.gmra.mrb[0].mxu0 %v1530
      %v1669 = vpop.f32.mrb[0].mxu0
      %v1670 = vadd.f32 %v1487, %v1669
      %v1671 = vpop.f32.mrb[0].mxu0
      %1672 = vmatprep.mubr.f32.mxu0 0.0
      %1673 = vmatmul.mubr.f32.gmra.mrb[0].mxu0 %v1533
      %v1674 = vpop.f32.mrb[0].mxu0
      %v1675 = vadd.f32 %v1487, %v1674
      %v1676 = vpop.f32.mrb[0].mxu0
      %1677 = vmatprep.mubr.f32.mxu0 0.0
      %1678 = vmatmul.mubr.f32.gmra.mrb[0].mxu0 %v1536
      %v1679 = vpop.f32.mrb[0].mxu0
      %v1680 = vadd.f32 %v1487, %v1679
      %v1681 = vpop.f32.mrb[0].mxu0
      %1682 = vdwg.mxu0
      %v1683 = vld [vmem:[#allocation4] sm:$0xff]
      %vm1684 = vcmask 64512
      %v1686 = vsel %vm1684, %v1605, 0
      %v1689 = vsel %vm1684, %v1610, 0
      %v1692 = vsel %vm1684, %v1615, 0
      %v1695 = vsel %vm1684, %v1620, 0
      %v1698 = vsel %vm1684, %v1625, 0
      %v1701 = vsel %vm1684, %v1630, 0
      %v1704 = vsel %vm1684, %v1635, 0
      %v1707 = vsel %vm1684, %v1640, 0
      %v1710 = vsel %vm1684, %v1645, 0
      %v1713 = vsel %vm1684, %v1650, 0
      %v1716 = vsel %vm1684, %v1655, 0
      %v1719 = vsel %vm1684, %v1660, 0
      %v1722 = vsel %vm1684, %v1665, 0
      %v1725 = vsel %vm1684, %v1670, 0
      %v1728 = vsel %vm1684, %v1675, 0
      %v1731 = vsel %vm1684, %v1680, 0
      %1733 = vmatprep.subr.mxu0 0.0
      %1734 = vmatpush1.msra.mxu0 %v1683
      %1735 = vmatprep.subr.mxu0 0.0
      %1736 = vmatpush1.msra.mxu0 0.0
      %1737 = vmatprep.subr.mxu0 0.0
      %1738 = vmatpush1.msra.mxu0 0.0
      %1739 = vmatprep.subr.mxu0 0.0
      %1740 = vmatpush1.msra.mxu0 0.0
      %1741 = vmatprep.subr.mxu0 0.0
      %1742 = vmatpush1.msra.mxu0 0.0
      %1743 = vmatprep.subr.mxu0 0.0
      %1744 = vmatpush1.msra.mxu0 0.0
      %1745 = vmatprep.subr.mxu0 0.0
      %1746 = vmatpush1.msra.mxu0 0.0
      %1747 = vmatprep.subr.mxu0 0.0
      %1748 = vmatpush1.msra.mxu0 0.0
      %1749 = vmatprep.subr.mxu0 0.0
      %1750 = vmatpush1.msra.mxu0 0.0
      %1751 = vmatprep.subr.mxu0 0.0
      %1752 = vmatpush1.msra.mxu0 0.0
      %1753 = vmatprep.subr.mxu0 0.0
      %1754 = vmatpush1.msra.mxu0 0.0
      %1755 = vmatprep.subr.mxu0 0.0
      %1756 = vmatpush1.msra.mxu0 0.0
      %1757 = vmatprep.subr.mxu0 0.0
      %1758 = vmatpush1.msra.mxu0 0.0
      %1759 = vmatprep.subr.mxu0 0.0
      %1760 = vmatpush1.msra.mxu0 0.0
      %1761 = vmatprep.subr.mxu0 0.0
      %1762 = vmatpush1.msra.mxu0 0.0
      %1763 = vmatprep.subr.mxu0 0.0
      %1764 = vmatpush1.msra.mxu0 0.0
      %1765 = vmatprep.subr.mxu0 0.0
      %1766 = vmatpush1.msra.mxu0 0.0
      %1767 = vmatprep.subr.mxu0 0.0
      %1768 = vmatpush1.msra.mxu0 0.0
      %1769 = vmatprep.subr.mxu0 0.0
      %1770 = vmatpush1.msra.mxu0 0.0
      %1771 = vmatprep.subr.mxu0 0.0
      %1772 = vmatpush1.msra.mxu0 0.0
      %1773 = vmatprep.subr.mxu0 0.0
      %1774 = vmatpush1.msra.mxu0 0.0
      %1775 = vmatprep.subr.mxu0 0.0
      %1776 = vmatpush1.msra.mxu0 0.0
      %1777 = vmatprep.subr.mxu0 0.0
      %1778 = vmatpush1.msra.mxu0 0.0
      %1779 = vmatprep.subr.mxu0 0.0
      %1780 = vmatpush1.msra.mxu0 0.0
      %1781 = vmatprep.subr.mxu0 0.0
      %1782 = vmatpush1.msra.mxu0 0.0
      %1783 = vmatprep.subr.mxu0 0.0
      %1784 = vmatpush1.msra.mxu0 0.0
      %1785 = vmatprep.subr.mxu0 0.0
      %1786 = vmatpush1.msra.mxu0 0.0
      %1787 = vmatprep.subr.mxu0 0.0
      %1788 = vmatpush1.msra.mxu0 0.0
      %1789 = vmatprep.subr.mxu0 0.0
      %1790 = vmatpush1.msra.mxu0 0.0
      %1791 = vmatprep.subr.mxu0 0.0
      %1792 = vmatpush1.msra.mxu0 0.0
      %1793 = vmatprep.subr.mxu0 0.0
      %1794 = vmatpush1.msra.mxu0 0.0
      %1795 = vmatprep.subr.mxu0 0.0
      %1796 = vmatpush1.msra.mxu0 0.0
      %1797 = vmatprep.mubr.f32.mxu0 0.0
      %1798 = vmatmul.mubr.f32.gmra.mrb[0].mxu0 %v1686
      %v1799 = vpop.f32.mrb[0].mxu0
      %v1800 = vadd.f32 0.0, %v1799
      %v1801 = vpop.f32.mrb[0].mxu0
      %1802 = vmatprep.mubr.f32.mxu0 0.0
      %1803 = vmatmul.mubr.f32.gmra.mrb[0].mxu0 %v1689
      %v1804 = vpop.f32.mrb[0].mxu0
      %v1805 = vadd.f32 0.0, %v1804
      %v1806 = vpop.f32.mrb[0].mxu0
      %1807 = vmatprep.mubr.f32.mxu0 0.0
      %1808 = vmatmul.mubr.f32.gmra.mrb[0].mxu0 %v1692
      %v1809 = vpop.f32.mrb[0].mxu0
      %v1810 = vadd.f32 0.0, %v1809
      %v1811 = vpop.f32.mrb[0].mxu0
      %1812 = vmatprep.mubr.f32.mxu0 0.0
      %1813 = vmatmul.mubr.f32.gmra.mrb[0].mxu0 %v1695
      %v1814 = vpop.f32.mrb[0].mxu0
      %v1815 = vadd.f32 0.0, %v1814
      %v1816 = vpop.f32.mrb[0].mxu0
      %1817 = vmatprep.mubr.f32.mxu0 0.0
      %1818 = vmatmul.mubr.f32.gmra.mrb[0].mxu0 %v1698
      %v1819 = vpop.f32.mrb[0].mxu0
      %v1820 = vadd.f32 0.0, %v1819
      %v1821 = vpop.f32.mrb[0].mxu0
      %1822 = vmatprep.mubr.f32.mxu0 0.0
      %1823 = vmatmul.mubr.f32.gmra.mrb[0].mxu0 %v1701
      %v1824 = vpop.f32.mrb[0].mxu0
      %v1825 = vadd.f32 0.0, %v1824
      %v1826 = vpop.f32.mrb[0].mxu0
      %1827 = vmatprep.mubr.f32.mxu0 0.0
      %1828 = vmatmul.mubr.f32.gmra.mrb[0].mxu0 %v1704
      %v1829 = vpop.f32.mrb[0].mxu0
      %v1830 = vadd.f32 0.0, %v1829
      %v1831 = vpop.f32.mrb[0].mxu0
      %1832 = vmatprep.mubr.f32.mxu0 0.0
      %1833 = vmatmul.mubr.f32.gmra.mrb[0].mxu0 %v1707
      %v1834 = vpop.f32.mrb[0].mxu0
      %v1835 = vadd.f32 0.0, %v1834
      %v1836 = vpop.f32.mrb[0].mxu0
      %1837 = vmatprep.mubr.f32.mxu0 0.0
      %1838 = vmatmul.mubr.f32.gmra.mrb[0].mxu0 %v1710
      %v1839 = vpop.f32.mrb[0].mxu0
      %v1840 = vadd.f32 0.0, %v1839
      %v1841 = vpop.f32.mrb[0].mxu0
      %1842 = vmatprep.mubr.f32.mxu0 0.0
      %1843 = vmatmul.mubr.f32.gmra.mrb[0].mxu0 %v1713
      %v1844 = vpop.f32.mrb[0].mxu0
      %v1845 = vadd.f32 0.0, %v1844
      %v1846 = vpop.f32.mrb[0].mxu0
      %1847 = vmatprep.mubr.f32.mxu0 0.0
      %1848 = vmatmul.mubr.f32.gmra.mrb[0].mxu0 %v1716
      %v1849 = vpop.f32.mrb[0].mxu0
      %v1850 = vadd.f32 0.0, %v1849
      %v1851 = vpop.f32.mrb[0].mxu0
      %1852 = vmatprep.mubr.f32.mxu0 0.0
      %1853 = vmatmul.mubr.f32.gmra.mrb[0].mxu0 %v1719
      %v1854 = vpop.f32.mrb[0].mxu0
      %v1855 = vadd.f32 0.0, %v1854
      %v1856 = vpop.f32.mrb[0].mxu0
      %1857 = vmatprep.mubr.f32.mxu0 0.0
      %1858 = vmatmul.mubr.f32.gmra.mrb[0].mxu0 %v1722
      %v1859 = vpop.f32.mrb[0].mxu0
      %v1860 = vadd.f32 0.0, %v1859
      %v1861 = vpop.f32.mrb[0].mxu0
      %1862 = vmatprep.mubr.f32.mxu0 0.0
      %1863 = vmatmul.mubr.f32.gmra.mrb[0].mxu0 %v1725
      %v1864 = vpop.f32.mrb[0].mxu0
      %v1865 = vadd.f32 0.0, %v1864
      %v1866 = vpop.f32.mrb[0].mxu0
      %1867 = vmatprep.mubr.f32.mxu0 0.0
      %1868 = vmatmul.mubr.f32.gmra.mrb[0].mxu0 %v1728
      %v1869 = vpop.f32.mrb[0].mxu0
      %v1870 = vadd.f32 0.0, %v1869
      %v1871 = vpop.f32.mrb[0].mxu0
      %1872 = vmatprep.mubr.f32.mxu0 0.0
      %1873 = vmatmul.mubr.f32.gmra.mrb[0].mxu0 %v1731
      %v1874 = vpop.f32.mrb[0].mxu0
      %v1875 = vadd.f32 0.0, %v1874
      %v1876 = vpop.f32.mrb[0].mxu0
      %1877 = vdwg.mxu0
      %vm1878 = vcmask 523264
      %v1879 = vsel %vm1878, %v1800, -inf
      %1880 = vmax.xlane.f32.xlu0 %v1879
      %v1881 = vpop.xlane.xlu0 %1880
      %v1882 = vsel %vm1878, %v1805, -inf
      %1883 = vmax.xlane.f32.xlu0 %v1882
      %v1884 = vpop.xlane.xlu0 %1883
      %v1885 = vsel %vm1878, %v1810, -inf
      %1886 = vmax.xlane.f32.xlu0 %v1885
      %v1887 = vpop.xlane.xlu0 %1886
      %v1888 = vsel %vm1878, %v1815, -inf
      %1889 = vmax.xlane.f32.xlu0 %v1888
      %v1890 = vpop.xlane.xlu0 %1889
      %v1891 = vsel %vm1878, %v1820, -inf
      %1892 = vmax.xlane.f32.xlu0 %v1891
      %v1893 = vpop.xlane.xlu0 %1892
      %v1894 = vsel %vm1878, %v1825, -inf
      %1895 = vmax.xlane.f32.xlu0 %v1894
      %v1896 = vpop.xlane.xlu0 %1895
      %v1897 = vsel %vm1878, %v1830, -inf
      %1898 = vmax.xlane.f32.xlu0 %v1897
      %v1899 = vpop.xlane.xlu0 %1898
      %v1900 = vsel %vm1878, %v1835, -inf
      %1901 = vmax.xlane.f32.xlu0 %v1900
      %v1902 = vpop.xlane.xlu0 %1901
      %v1903 = vsel %vm1878, %v1840, -inf
      %1904 = vmax.xlane.f32.xlu0 %v1903
      %v1905 = vpop.xlane.xlu0 %1904
      %v1906 = vsel %vm1878, %v1845, -inf
      %1907 = vmax.xlane.f32.xlu0 %v1906
      %v1908 = vpop.xlane.xlu0 %1907
      %v1909 = vsel %vm1878, %v1850, -inf
      %1910 = vmax.xlane.f32.xlu0 %v1909
      %v1911 = vpop.xlane.xlu0 %1910
      %v1912 = vsel %vm1878, %v1855, -inf
      %1913 = vmax.xlane.f32.xlu0 %v1912
      %v1914 = vpop.xlane.xlu0 %1913
      %v1915 = vsel %vm1878, %v1860, -inf
      %1916 = vmax.xlane.f32.xlu0 %v1915
      %v1917 = vpop.xlane.xlu0 %1916
      %v1918 = vsel %vm1878, %v1865, -inf
      %1919 = vmax.xlane.f32.xlu0 %v1918
      %v1920 = vpop.xlane.xlu0 %1919
      %v1921 = vsel %vm1878, %v1870, -inf
      %1922 = vmax.xlane.f32.xlu0 %v1921
      %v1923 = vpop.xlane.xlu0 %1922
      %v1924 = vsel %vm1878, %v1875, -inf
      %1925 = vmax.xlane.f32.xlu0 %v1924
      %v1926 = vpop.xlane.xlu0 %1925
      %v1927 = vsub.f32 %v1800, %v1881
      %v1928 = vsub.f32 %v1805, %v1884
      %v1929 = vsub.f32 %v1810, %v1887
      %v1930 = vsub.f32 %v1815, %v1890
      %v1931 = vsub.f32 %v1820, %v1893
      %v1932 = vsub.f32 %v1825, %v1896
      %v1933 = vsub.f32 %v1830, %v1899
      %v1934 = vsub.f32 %v1835, %v1902
      %v1935 = vsub.f32 %v1840, %v1905
      %v1936 = vsub.f32 %v1845, %v1908
      %v1937 = vsub.f32 %v1850, %v1911
      %v1938 = vsub.f32 %v1855, %v1914
      %v1939 = vsub.f32 %v1860, %v1917
      %v1940 = vsub.f32 %v1865, %v1920
      %v1941 = vsub.f32 %v1870, %v1923
      %v1942 = vsub.f32 %v1875, %v1926
      %v1943 = vmul.f32 %v1927, 1.442695
      %v1944 = vpow.pop %v1943
      %v1945 = vmul.f32 %v1928, 1.442695
      %v1946 = vpow.pop %v1945
      %v1947 = vmul.f32 %v1929, 1.442695
      %v1948 = vpow.pop %v1947
      %v1949 = vmul.f32 %v1930, 1.442695
      %v1950 = vpow.pop %v1949
      %v1951 = vmul.f32 %v1931, 1.442695
      %v1952 = vpow.pop %v1951
      %v1953 = vmul.f32 %v1932, 1.442695
      %v1954 = vpow.pop %v1953
      %v1955 = vmul.f32 %v1933, 1.442695
      %v1956 = vpow.pop %v1955
      %v1957 = vmul.f32 %v1934, 1.442695
      %v1958 = vpow.pop %v1957
      %v1959 = vmul.f32 %v1935, 1.442695
      %v1960 = vpow.pop %v1959
      %v1961 = vmul.f32 %v1936, 1.442695
      %v1962 = vpow.pop %v1961
      %v1963 = vmul.f32 %v1937, 1.442695
      %v1964 = vpow.pop %v1963
      %v1965 = vmul.f32 %v1938, 1.442695
      %v1966 = vpow.pop %v1965
      %v1967 = vmul.f32 %v1939, 1.442695
      %v1968 = vpow.pop %v1967
      %v1969 = vmul.f32 %v1940, 1.442695
      %v1970 = vpow.pop %v1969
      %v1971 = vmul.f32 %v1941, 1.442695
      %v1972 = vpow.pop %v1971
      %v1973 = vmul.f32 %v1942, 1.442695
      %v1974 = vpow.pop %v1973
      %v1975 = vsel %vm1878, %v1944, 0.0
      %1976 = vadd.xlane.f32.xlu0 %v1975
      %v1977 = vpop.xlane.xlu0 %1976
      %v1978 = vsel %vm1878, %v1946, 0.0
      %1979 = vadd.xlane.f32.xlu0 %v1978
      %v1980 = vpop.xlane.xlu0 %1979
      %v1981 = vsel %vm1878, %v1948, 0.0
      %1982 = vadd.xlane.f32.xlu0 %v1981
      %v1983 = vpop.xlane.xlu0 %1982
      %v1984 = vsel %vm1878, %v1950, 0.0
      %1985 = vadd.xlane.f32.xlu0 %v1984
      %v1986 = vpop.xlane.xlu0 %1985
      %v1987 = vsel %vm1878, %v1952, 0.0
      %1988 = vadd.xlane.f32.xlu0 %v1987
      %v1989 = vpop.xlane.xlu0 %1988
      %v1990 = vsel %vm1878, %v1954, 0.0
      %1991 = vadd.xlane.f32.xlu0 %v1990
      %v1992 = vpop.xlane.xlu0 %1991
      %v1993 = vsel %vm1878, %v1956, 0.0
      %1994 = vadd.xlane.f32.xlu0 %v1993
      %v1995 = vpop.xlane.xlu0 %1994
      %v1996 = vsel %vm1878, %v1958, 0.0
      %1997 = vadd.xlane.f32.xlu0 %v1996
      %v1998 = vpop.xlane.xlu0 %1997
      %v1999 = vsel %vm1878, %v1960, 0.0
      %2000 = vadd.xlane.f32.xlu0 %v1999
      %v2001 = vpop.xlane.xlu0 %2000
      %v2002 = vsel %vm1878, %v1962, 0.0
      %2003 = vadd.xlane.f32.xlu0 %v2002
      %v2004 = vpop.xlane.xlu0 %2003
      %v2005 = vsel %vm1878, %v1964, 0.0
      %2006 = vadd.xlane.f32.xlu0 %v2005
      %v2007 = vpop.xlane.xlu0 %2006
      %v2008 = vsel %vm1878, %v1966, 0.0
      %2009 = vadd.xlane.f32.xlu0 %v2008
      %v2010 = vpop.xlane.xlu0 %2009
      %v2011 = vsel %vm1878, %v1968, 0.0
      %2012 = vadd.xlane.f32.xlu0 %v2011
      %v2013 = vpop.xlane.xlu0 %2012
      %v2014 = vsel %vm1878, %v1970, 0.0
      %2015 = vadd.xlane.f32.xlu0 %v2014
      %v2016 = vpop.xlane.xlu0 %2015
      %v2017 = vsel %vm1878, %v1972, 0.0
      %2018 = vadd.xlane.f32.xlu0 %v2017
      %v2019 = vpop.xlane.xlu0 %2018
      %v2020 = vsel %vm1878, %v1974, 0.0
      %2021 = vadd.xlane.f32.xlu0 %v2020
      %v2022 = vpop.xlane.xlu0 %2021
      %v2023 = vld [vmem:[#allocation5] sm:$0xff]
      %v2024 = vld [vmem:[#allocation5 + $0x8] sm:$0xff]
      %v2025 = vld [vmem:[#allocation5 + $0x10] sm:$0xff]
      %v2026 = vld [vmem:[#allocation5 + $0x18] sm:$0xff]
      %v2027 = vld [vmem:[#allocation5 + $0x20] sm:$0xff]
      %v2028 = vld [vmem:[#allocation5 + $0x28] sm:$0xff]
      %v2029 = vld [vmem:[#allocation5 + $0x30] sm:$0xff]
      %v2030 = vld [vmem:[#allocation5 + $0x38] sm:$0xff]
      %v2032 = vsel %vm1878, %v1944, 0
      %v2035 = vsel %vm1878, %v1946, 0
      %v2038 = vsel %vm1878, %v1948, 0
      %v2041 = vsel %vm1878, %v1950, 0
      %v2044 = vsel %vm1878, %v1952, 0
      %v2047 = vsel %vm1878, %v1954, 0
      %v2050 = vsel %vm1878, %v1956, 0
      %v2053 = vsel %vm1878, %v1958, 0
      %v2056 = vsel %vm1878, %v1960, 0
      %v2059 = vsel %vm1878, %v1962, 0
      %v2062 = vsel %vm1878, %v1964, 0
      %v2065 = vsel %vm1878, %v1966, 0
      %v2068 = vsel %vm1878, %v1968, 0
      %v2071 = vsel %vm1878, %v1970, 0
      %v2074 = vsel %vm1878, %v1972, 0
      %v2077 = vsel %vm1878, %v1974, 0
      %2079 = vmatprep.subr.mxu0 0.0
      %2080 = vmatpush1.msra.mxu0 %v2023
      %2081 = vmatprep.subr.mxu0 0.0
      %2082 = vmatpush1.msra.mxu0 %v2024
      %2083 = vmatprep.subr.mxu0 0.0
      %2084 = vmatpush1.msra.mxu0 %v2025
      %2085 = vmatprep.subr.mxu0 0.0
      %2086 = vmatpush1.msra.mxu0 %v2026
      %2087 = vmatprep.subr.mxu0 0.0
      %2088 = vmatpush1.msra.mxu0 %v2027
      %2089 = vmatprep.subr.mxu0 0.0
      %2090 = vmatpush1.msra.mxu0 %v2028
      %2091 = vmatprep.subr.mxu0 0.0
      %2092 = vmatpush1.msra.mxu0 %v2029
      %2093 = vmatprep.subr.mxu0 0.0
      %2094 = vmatpush1.msra.mxu0 %v2030
      %2095 = vmatprep.subr.mxu0 0.0
      %2096 = vmatpush1.msra.mxu0 0.0
      %2097 = vmatprep.subr.mxu0 0.0
      %2098 = vmatpush1.msra.mxu0 0.0
      %2099 = vmatprep.subr.mxu0 0.0
      %2100 = vmatpush1.msra.mxu0 0.0
      %2101 = vmatprep.subr.mxu0 0.0
      %2102 = vmatpush1.msra.mxu0 0.0
      %2103 = vmatprep.subr.mxu0 0.0
      %2104 = vmatpush1.msra.mxu0 0.0
      %2105 = vmatprep.subr.mxu0 0.0
      %2106 = vmatpush1.msra.mxu0 0.0
      %2107 = vmatprep.subr.mxu0 0.0
      %2108 = vmatpush1.msra.mxu0 0.0
      %2109 = vmatprep.subr.mxu0 0.0
      %2110 = vmatpush1.msra.mxu0 0.0
      %2111 = vmatprep.subr.mxu0 0.0
      %2112 = vmatpush1.msra.mxu0 0.0
      %2113 = vmatprep.subr.mxu0 0.0
      %2114 = vmatpush1.msra.mxu0 0.0
      %2115 = vmatprep.subr.mxu0 0.0
      %2116 = vmatpush1.msra.mxu0 0.0
      %2117 = vmatprep.subr.mxu0 0.0
      %2118 = vmatpush1.msra.mxu0 0.0
      %2119 = vmatprep.subr.mxu0 0.0
      %2120 = vmatpush1.msra.mxu0 0.0
      %2121 = vmatprep.subr.mxu0 0.0
      %2122 = vmatpush1.msra.mxu0 0.0
      %2123 = vmatprep.subr.mxu0 0.0
      %2124 = vmatpush1.msra.mxu0 0.0
      %2125 = vmatprep.subr.mxu0 0.0
      %2126 = vmatpush1.msra.mxu0 0.0
      %2127 = vmatprep.subr.mxu0 0.0
      %2128 = vmatpush1.msra.mxu0 0.0
      %2129 = vmatprep.subr.mxu0 0.0
      %2130 = vmatpush1.msra.mxu0 0.0
      %2131 = vmatprep.subr.mxu0 0.0
      %2132 = vmatpush1.msra.mxu0 0.0
      %2133 = vmatprep.subr.mxu0 0.0
      %2134 = vmatpush1.msra.mxu0 0.0
      %2135 = vmatprep.subr.mxu0 0.0
      %2136 = vmatpush1.msra.mxu0 0.0
      %2137 = vmatprep.subr.mxu0 0.0
      %2138 = vmatpush1.msra.mxu0 0.0
      %2139 = vmatprep.subr.mxu0 0.0
      %2140 = vmatpush1.msra.mxu0 0.0
      %2141 = vmatprep.subr.mxu0 0.0
      %2142 = vmatpush1.msra.mxu0 0.0
      %2143 = vmatprep.mubr.f32.mxu0 0.0
      %2144 = vmatmul.mubr.f32.gmra.mrb[0].mxu0 %v2032
      %v2145 = vpop.f32.mrb[0].mxu0
      %v2146 = vadd.f32 0.0, %v2145
      %v2147 = vpop.f32.mrb[0].mxu0
      %2148 = vmatprep.mubr.f32.mxu0 0.0
      %2149 = vmatmul.mubr.f32.gmra.mrb[0].mxu0 %v2035
      %v2150 = vpop.f32.mrb[0].mxu0
      %v2151 = vadd.f32 0.0, %v2150
      %v2152 = vpop.f32.mrb[0].mxu0
      %2153 = vmatprep.mubr.f32.mxu0 0.0
      %2154 = vmatmul.mubr.f32.gmra.mrb[0].mxu0 %v2038
      %v2155 = vpop.f32.mrb[0].mxu0
      %v2156 = vadd.f32 0.0, %v2155
      %v2157 = vpop.f32.mrb[0].mxu0
      %2158 = vmatprep.mubr.f32.mxu0 0.0
      %2159 = vmatmul.mubr.f32.gmra.mrb[0].mxu0 %v2041
      %v2160 = vpop.f32.mrb[0].mxu0
      %v2161 = vadd.f32 0.0, %v2160
      %v2162 = vpop.f32.mrb[0].mxu0
      %2163 = vmatprep.mubr.f32.mxu0 0.0
      %2164 = vmatmul.mubr.f32.gmra.mrb[0].mxu0 %v2044
      %v2165 = vpop.f32.mrb[0].mxu0
      %v2166 = vadd.f32 0.0, %v2165
      %v2167 = vpop.f32.mrb[0].mxu0
      %2168 = vmatprep.mubr.f32.mxu0 0.0
      %2169 = vmatmul.mubr.f32.gmra.mrb[0].mxu0 %v2047
      %v2170 = vpop.f32.mrb[0].mxu0
      %v2171 = vadd.f32 0.0, %v2170
      %v2172 = vpop.f32.mrb[0].mxu0
      %2173 = vmatprep.mubr.f32.mxu0 0.0
      %2174 = vmatmul.mubr.f32.gmra.mrb[0].mxu0 %v2050
      %v2175 = vpop.f32.mrb[0].mxu0
      %v2176 = vadd.f32 0.0, %v2175
      %v2177 = vpop.f32.mrb[0].mxu0
      %2178 = vmatprep.mubr.f32.mxu0 0.0
      %2179 = vmatmul.mubr.f32.gmra.mrb[0].mxu0 %v2053
      %v2180 = vpop.f32.mrb[0].mxu0
      %v2181 = vadd.f32 0.0, %v2180
      %v2182 = vpop.f32.mrb[0].mxu0
      %2183 = vmatprep.mubr.f32.mxu0 0.0
      %2184 = vmatmul.mubr.f32.gmra.mrb[0].mxu0 %v2056
      %v2185 = vpop.f32.mrb[0].mxu0
      %v2186 = vadd.f32 0.0, %v2185
      %v2187 = vpop.f32.mrb[0].mxu0
      %2188 = vmatprep.mubr.f32.mxu0 0.0
      %2189 = vmatmul.mubr.f32.gmra.mrb[0].mxu0 %v2059
      %v2190 = vpop.f32.mrb[0].mxu0
      %v2191 = vadd.f32 0.0, %v2190
      %v2192 = vpop.f32.mrb[0].mxu0
      %2193 = vmatprep.mubr.f32.mxu0 0.0
      %2194 = vmatmul.mubr.f32.gmra.mrb[0].mxu0 %v2062
      %v2195 = vpop.f32.mrb[0].mxu0
      %v2196 = vadd.f32 0.0, %v2195
      %v2197 = vpop.f32.mrb[0].mxu0
      %2198 = vmatprep.mubr.f32.mxu0 0.0
      %2199 = vmatmul.mubr.f32.gmra.mrb[0].mxu0 %v2065
      %v2200 = vpop.f32.mrb[0].mxu0
      %v2201 = vadd.f32 0.0, %v2200
      %v2202 = vpop.f32.mrb[0].mxu0
      %2203 = vmatprep.mubr.f32.mxu0 0.0
      %2204 = vmatmul.mubr.f32.gmra.mrb[0].mxu0 %v2068
      %v2205 = vpop.f32.mrb[0].mxu0
      %v2206 = vadd.f32 0.0, %v2205
      %v2207 = vpop.f32.mrb[0].mxu0
      %2208 = vmatprep.mubr.f32.mxu0 0.0
      %2209 = vmatmul.mubr.f32.gmra.mrb[0].mxu0 %v2071
      %v2210 = vpop.f32.mrb[0].mxu0
      %v2211 = vadd.f32 0.0, %v2210
      %v2212 = vpop.f32.mrb[0].mxu0
      %2213 = vmatprep.mubr.f32.mxu0 0.0
      %2214 = vmatmul.mubr.f32.gmra.mrb[0].mxu0 %v2074
      %v2215 = vpop.f32.mrb[0].mxu0
      %v2216 = vadd.f32 0.0, %v2215
      %v2217 = vpop.f32.mrb[0].mxu0
      %2218 = vmatprep.mubr.f32.mxu0 0.0
      %2219 = vmatmul.mubr.f32.gmra.mrb[0].mxu0 %v2077
      %v2220 = vpop.f32.mrb[0].mxu0
      %v2221 = vadd.f32 0.0, %v2220
      %v2222 = vpop.f32.mrb[0].mxu0
      %2223 = vdwg.mxu0
      %v2224 = vrcp.pop %v1977
      %v2225 = vmul.f32 1.0, %v2224
      %v2226 = vrcp.pop %v1980
      %v2227 = vmul.f32 1.0, %v2226
      %v2228 = vrcp.pop %v1983
      %v2229 = vmul.f32 1.0, %v2228
      %v2230 = vrcp.pop %v1986
      %v2231 = vmul.f32 1.0, %v2230
      %v2232 = vrcp.pop %v1989
      %v2233 = vmul.f32 1.0, %v2232
      %v2234 = vrcp.pop %v1992
      %v2235 = vmul.f32 1.0, %v2234
      %v2236 = vrcp.pop %v1995
      %v2237 = vmul.f32 1.0, %v2236
      %v2238 = vrcp.pop %v1998
      %v2239 = vmul.f32 1.0, %v2238
      %v2240 = vrcp.pop %v2001
      %v2241 = vmul.f32 1.0, %v2240
      %v2242 = vrcp.pop %v2004
      %v2243 = vmul.f32 1.0, %v2242
      %v2244 = vrcp.pop %v2007
      %v2245 = vmul.f32 1.0, %v2244
      %v2246 = vrcp.pop %v2010
      %v2247 = vmul.f32 1.0, %v2246
      %v2248 = vrcp.pop %v2013
      %v2249 = vmul.f32 1.0, %v2248
      %v2250 = vrcp.pop %v2016
      %v2251 = vmul.f32 1.0, %v2250
      %v2252 = vrcp.pop %v2019
      %v2253 = vmul.f32 1.0, %v2252
      %v2254 = vrcp.pop %v2022
      %v2255 = vmul.f32 1.0, %v2254
      %v2256 = vmul.f32 %v2146, %v2225
      %v2257 = vmul.f32 %v2151, %v2227
      %v2258 = vmul.f32 %v2156, %v2229
      %v2259 = vmul.f32 %v2161, %v2231
      %v2260 = vmul.f32 %v2166, %v2233
      %v2261 = vmul.f32 %v2171, %v2235
      %v2262 = vmul.f32 %v2176, %v2237
      %v2263 = vmul.f32 %v2181, %v2239
      %v2264 = vmul.f32 %v2186, %v2241
      %v2265 = vmul.f32 %v2191, %v2243
      %v2266 = vmul.f32 %v2196, %v2245
      %v2267 = vmul.f32 %v2201, %v2247
      %v2268 = vmul.f32 %v2206, %v2249
      %v2269 = vmul.f32 %v2211, %v2251
      %v2270 = vmul.f32 %v2216, %v2253
      %v2271 = vmul.f32 %v2221, %v2255
      %v2272 = vld [vmem:[%s5] sm:$0xff]
      %v2273 = vld [vmem:[%s5 + $0x8] sm:$0xff]
      %v2274 = vld [vmem:[%s6] sm:$0x1]
      %v2276 = vlaneseq
      %v2277 = vshrl.u32 %v2276, 7
      %v2278 = vsub.s32 0, %v2277
      %v2279 = vrot.slane %v2274, %v2278
      %vm2281 = vcmask 130048
      %v2283 = vsel %vm2281, %v2256, 0
      %v2286 = vsel %vm2281, %v2257, 0
      %v2289 = vsel %vm2281, %v2258, 0
      %v2292 = vsel %vm2281, %v2259, 0
      %v2295 = vsel %vm2281, %v2260, 0
      %v2298 = vsel %vm2281, %v2261, 0
      %v2301 = vsel %vm2281, %v2262, 0
      %v2304 = vsel %vm2281, %v2263, 0
      %v2307 = vsel %vm2281, %v2264, 0
      %v2310 = vsel %vm2281, %v2265, 0
      %v2313 = vsel %vm2281, %v2266, 0
      %v2316 = vsel %vm2281, %v2267, 0
      %v2319 = vsel %vm2281, %v2268, 0
      %v2322 = vsel %vm2281, %v2269, 0
      %v2325 = vsel %vm2281, %v2270, 0
      %v2328 = vsel %vm2281, %v2271, 0
      %2330 = vmatprep.subr.mxu0 0.0
      %2331 = vmatpush1.msra.mxu0 %v2272
      %2332 = vmatprep.subr.mxu0 0.0
      %2333 = vmatpush1.msra.mxu0 %v2273
      %2334 = vmatprep.subr.mxu0 0.0
      %2335 = vmatpush1.msra.mxu0 0.0
      %2336 = vmatprep.subr.mxu0 0.0
      %2337 = vmatpush1.msra.mxu0 0.0
      %2338 = vmatprep.subr.mxu0 0.0
      %2339 = vmatpush1.msra.mxu0 0.0
      %2340 = vmatprep.subr.mxu0 0.0
      %2341 = vmatpush1.msra.mxu0 0.0
      %2342 = vmatprep.subr.mxu0 0.0
      %2343 = vmatpush1.msra.mxu0 0.0
      %2344 = vmatprep.subr.mxu0 0.0
      %2345 = vmatpush1.msra.mxu0 0.0
      %2346 = vmatprep.subr.mxu0 0.0
      %2347 = vmatpush1.msra.mxu0 0.0
      %2348 = vmatprep.subr.mxu0 0.0
      %2349 = vmatpush1.msra.mxu0 0.0
      %2350 = vmatprep.subr.mxu0 0.0
      %2351 = vmatpush1.msra.mxu0 0.0
      %2352 = vmatprep.subr.mxu0 0.0
      %2353 = vmatpush1.msra.mxu0 0.0
      %2354 = vmatprep.subr.mxu0 0.0
      %2355 = vmatpush1.msra.mxu0 0.0
      %2356 = vmatprep.subr.mxu0 0.0
      %2357 = vmatpush1.msra.mxu0 0.0
      %2358 = vmatprep.subr.mxu0 0.0
      %2359 = vmatpush1.msra.mxu0 0.0
      %2360 = vmatprep.subr.mxu0 0.0
      %2361 = vmatpush1.msra.mxu0 0.0
      %2362 = vmatprep.subr.mxu0 0.0
      %2363 = vmatpush1.msra.mxu0 0.0
      %2364 = vmatprep.subr.mxu0 0.0
      %2365 = vmatpush1.msra.mxu0 0.0
      %2366 = vmatprep.subr.mxu0 0.0
      %2367 = vmatpush1.msra.mxu0 0.0
      %2368 = vmatprep.subr.mxu0 0.0
      %2369 = vmatpush1.msra.mxu0 0.0
      %2370 = vmatprep.subr.mxu0 0.0
      %2371 = vmatpush1.msra.mxu0 0.0
      %2372 = vmatprep.subr.mxu0 0.0
      %2373 = vmatpush1.msra.mxu0 0.0
      %2374 = vmatprep.subr.mxu0 0.0
      %2375 = vmatpush1.msra.mxu0 0.0
      %2376 = vmatprep.subr.mxu0 0.0
      %2377 = vmatpush1.msra.mxu0 0.0
      %2378 = vmatprep.subr.mxu0 0.0
      %2379 = vmatpush1.msra.mxu0 0.0
      %2380 = vmatprep.subr.mxu0 0.0
      %2381 = vmatpush1.msra.mxu0 0.0
      %2382 = vmatprep.subr.mxu0 0.0
      %2383 = vmatpush1.msra.mxu0 0.0
      %2384 = vmatprep.subr.mxu0 0.0
      %2385 = vmatpush1.msra.mxu0 0.0
      %2386 = vmatprep.subr.mxu0 0.0
      %2387 = vmatpush1.msra.mxu0 0.0
      %2388 = vmatprep.subr.mxu0 0.0
      %2389 = vmatpush1.msra.mxu0 0.0
      %2390 = vmatprep.subr.mxu0 0.0
      %2391 = vmatpush1.msra.mxu0 0.0
      %2392 = vmatprep.subr.mxu0 0.0
      %2393 = vmatpush1.msra.mxu0 0.0
      %2394 = vmatprep.mubr.f32.mxu0 0.0
      %2395 = vmatmul.mubr.f32.gmra.mrb[0].mxu0 %v2283
      %v2396 = vpop.f32.mrb[0].mxu0
      %v2397 = vadd.f32 %v2279, %v2396
      %v2398 = vpop.f32.mrb[0].mxu0
      %2399 = vmatprep.mubr.f32.mxu0 0.0
      %2400 = vmatmul.mubr.f32.gmra.mrb[0].mxu0 %v2286
      %v2401 = vpop.f32.mrb[0].mxu0
      %v2402 = vadd.f32 %v2279, %v2401
      %v2403 = vpop.f32.mrb[0].mxu0
      %2404 = vmatprep.mubr.f32.mxu0 0.0
      %2405 = vmatmul.mubr.f32.gmra.mrb[0].mxu0 %v2289
      %v2406 = vpop.f32.mrb[0].mxu0
      %v2407 = vadd.f32 %v2279, %v2406
      %v2408 = vpop.f32.mrb[0].mxu0
      %2409 = vmatprep.mubr.f32.mxu0 0.0
      %2410 = vmatmul.mubr.f32.gmra.mrb[0].mxu0 %v2292
      %v2411 = vpop.f32.mrb[0].mxu0
      %v2412 = vadd.f32 %v2279, %v2411
      %v2413 = vpop.f32.mrb[0].mxu0
      %2414 = vmatprep.mubr.f32.mxu0 0.0
      %2415 = vmatmul.mubr.f32.gmra.mrb[0].mxu0 %v2295
      %v2416 = vpop.f32.mrb[0].mxu0
      %v2417 = vadd.f32 %v2279, %v2416
      %v2418 = vpop.f32.mrb[0].mxu0
      %2419 = vmatprep.mubr.f32.mxu0 0.0
      %2420 = vmatmul.mubr.f32.gmra.mrb[0].mxu0 %v2298
      %v2421 = vpop.f32.mrb[0].mxu0
      %v2422 = vadd.f32 %v2279, %v2421
      %v2423 = vpop.f32.mrb[0].mxu0
      %2424 = vmatprep.mubr.f32.mxu0 0.0
      %2425 = vmatmul.mubr.f32.gmra.mrb[0].mxu0 %v2301
      %v2426 = vpop.f32.mrb[0].mxu0
      %v2427 = vadd.f32 %v2279, %v2426
      %v2428 = vpop.f32.mrb[0].mxu0
      %2429 = vmatprep.mubr.f32.mxu0 0.0
      %2430 = vmatmul.mubr.f32.gmra.mrb[0].mxu0 %v2304
      %v2431 = vpop.f32.mrb[0].mxu0
      %v2432 = vadd.f32 %v2279, %v2431
      %v2433 = vpop.f32.mrb[0].mxu0
      %2434 = vmatprep.mubr.f32.mxu0 0.0
      %2435 = vmatmul.mubr.f32.gmra.mrb[0].mxu0 %v2307
      %v2436 = vpop.f32.mrb[0].mxu0
      %v2437 = vadd.f32 %v2279, %v2436
      %v2438 = vpop.f32.mrb[0].mxu0
      %2439 = vmatprep.mubr.f32.mxu0 0.0
      %2440 = vmatmul.mubr.f32.gmra.mrb[0].mxu0 %v2310
      %v2441 = vpop.f32.mrb[0].mxu0
      %v2442 = vadd.f32 %v2279, %v2441
      %v2443 = vpop.f32.mrb[0].mxu0
      %2444 = vmatprep.mubr.f32.mxu0 0.0
      %2445 = vmatmul.mubr.f32.gmra.mrb[0].mxu0 %v2313
      %v2446 = vpop.f32.mrb[0].mxu0
      %v2447 = vadd.f32 %v2279, %v2446
      %v2448 = vpop.f32.mrb[0].mxu0
      %2449 = vmatprep.mubr.f32.mxu0 0.0
      %2450 = vmatmul.mubr.f32.gmra.mrb[0].mxu0 %v2316
      %v2451 = vpop.f32.mrb[0].mxu0
      %v2452 = vadd.f32 %v2279, %v2451
      %v2453 = vpop.f32.mrb[0].mxu0
      %2454 = vmatprep.mubr.f32.mxu0 0.0
      %2455 = vmatmul.mubr.f32.gmra.mrb[0].mxu0 %v2319
      %v2456 = vpop.f32.mrb[0].mxu0
      %v2457 = vadd.f32 %v2279, %v2456
      %v2458 = vpop.f32.mrb[0].mxu0
      %2459 = vmatprep.mubr.f32.mxu0 0.0
      %2460 = vmatmul.mubr.f32.gmra.mrb[0].mxu0 %v2322
      %v2461 = vpop.f32.mrb[0].mxu0
      %v2462 = vadd.f32 %v2279, %v2461
      %v2463 = vpop.f32.mrb[0].mxu0
      %2464 = vmatprep.mubr.f32.mxu0 0.0
      %2465 = vmatmul.mubr.f32.gmra.mrb[0].mxu0 %v2325
      %v2466 = vpop.f32.mrb[0].mxu0
      %v2467 = vadd.f32 %v2279, %v2466
      %v2468 = vpop.f32.mrb[0].mxu0
      %2469 = vmatprep.mubr.f32.mxu0 0.0
      %2470 = vmatmul.mubr.f32.gmra.mrb[0].mxu0 %v2328
      %v2471 = vpop.f32.mrb[0].mxu0
      %v2472 = vadd.f32 %v2279, %v2471
      %v2473 = vpop.f32.mrb[0].mxu0
      %2474 = vdwg.mxu0
      %s2475 = sld [smem:[#allocation6]]
      %v2476 = vstv %s2475
      %v2477 = vmul.f32 %v2476, %v2397
      %v2478 = vmul.f32 %v2476, %v2402
      %v2479 = vmul.f32 %v2476, %v2407
      %v2480 = vmul.f32 %v2476, %v2412
      %v2481 = vmul.f32 %v2476, %v2417
      %v2482 = vmul.f32 %v2476, %v2422
      %v2483 = vmul.f32 %v2476, %v2427
      %v2484 = vmul.f32 %v2476, %v2432
      %v2485 = vmul.f32 %v2476, %v2437
      %v2486 = vmul.f32 %v2476, %v2442
      %v2487 = vmul.f32 %v2476, %v2447
      %v2488 = vmul.f32 %v2476, %v2452
      %v2489 = vmul.f32 %v2476, %v2457
      %v2490 = vmul.f32 %v2476, %v2462
      %v2491 = vmul.f32 %v2476, %v2467
      %v2492 = vmul.f32 %v2476, %v2472
      %v2493 = vadd.f32 %v1462, %v2477
      %v2494 = vadd.f32 %v1463, %v2478
      %v2495 = vadd.f32 %v1464, %v2479
      %v2496 = vadd.f32 %v1465, %v2480
      %v2497 = vadd.f32 %v1466, %v2481
      %v2498 = vadd.f32 %v1467, %v2482
      %v2499 = vadd.f32 %v1468, %v2483
      %v2500 = vadd.f32 %v1469, %v2484
      %v2501 = vadd.f32 %v1470, %v2485
      %v2502 = vadd.f32 %v1471, %v2486
      %v2503 = vadd.f32 %v1472, %v2487
      %v2504 = vadd.f32 %v1473, %v2488
      %v2505 = vadd.f32 %v1474, %v2489
      %v2506 = vadd.f32 %v1475, %v2490
      %v2507 = vadd.f32 %v1476, %v2491
      %v2508 = vadd.f32 %v1477, %v2492
      %2509 = vst.msk [vmem:[%s328] sm:$0xff] %vm1489, %v2493
      %2510 = vst.msk [vmem:[%s328 + $0x8] sm:$0xff] %vm1489, %v2494
      %2511 = vst.msk [vmem:[%s328 + $0x10] sm:$0xff] %vm1489, %v2495
      %2512 = vst.msk [vmem:[%s328 + $0x18] sm:$0xff] %vm1489, %v2496
      %2513 = vst.msk [vmem:[%s328 + $0x20] sm:$0xff] %vm1489, %v2497
      %2514 = vst.msk [vmem:[%s328 + $0x28] sm:$0xff] %vm1489, %v2498
      %2515 = vst.msk [vmem:[%s328 + $0x30] sm:$0xff] %vm1489, %v2499
      %2516 = vst.msk [vmem:[%s328 + $0x38] sm:$0xff] %vm1489, %v2500
      %2517 = vst.msk [vmem:[%s328 + $0x40] sm:$0xff] %vm1489, %v2501
      %2518 = vst.msk [vmem:[%s328 + $0x48] sm:$0xff] %vm1489, %v2502
      %2519 = vst.msk [vmem:[%s328 + $0x50] sm:$0xff] %vm1489, %v2503
      %2520 = vst.msk [vmem:[%s328 + $0x58] sm:$0xff] %vm1489, %v2504
      %2521 = vst.msk [vmem:[%s328 + $0x60] sm:$0xff] %vm1489, %v2505
      %2522 = vst.msk [vmem:[%s328 + $0x68] sm:$0xff] %vm1489, %v2506
      %2523 = vst.msk [vmem:[%s328 + $0x70] sm:$0xff] %vm1489, %v2507
      %2524 = vst.msk [vmem:[%s328 + $0x78] sm:$0xff] %vm1489, %v2508
      %s2525 = smul.u32 16, %s25
      %p2526 = scmp.lt.s32.totalorder %s24, 1
      %s2527 = scalar_select %p2526, %s24, 1
      %p2528 = scmp.lt.s32.totalorder %s2525, 31
      %s2529 = scalar_select %p2528, %s2525, 31
      %s2530 = smul.addr %s2527, 32
      %s2531 = sadd.s32 %s2529, %s2530
      %s2532 = smul.addr %s2531, 8
      %s2533 = scalar_lea.vmem %s8, %s2532
      // Predicated region
      $region57: #{tpu_custom_call.1} parent=51 // pred_check
        %p2534 = pneg %p225
      $region58: #{tpu_custom_call.1} parent=51 // pred_check_branch
        %2536 = sbr.rel (%p2534) target = $region60
      $region59: #{tpu_custom_call.1} parent=51 // pred_region
        %s2537 = smul.u32 16, %s25
      $region60: #{tpu_custom_call.1} parent=51 // pred_fallthru
        _
    $region52: #{tpu_custom_call.1} parent=5 // pred_fallthru
      _
    %p2538 = scmp.le.s32.totalorder 2, %s15
    // Predicated region
    $region61: #{tpu_custom_call.1} parent=5 // pred_check
      %p2539 = pneg %p2538
    $region62: #{tpu_custom_call.1} parent=5 // pred_check_branch
      %2541 = sbr.rel (%p2539) target = $region64
    $region63: #{tpu_custom_call.1} parent=5 // pred_region
      %s2542 = ssub.s32 %s15, 2
      // Predicated region
      $region65: #{tpu_custom_call.1} parent=63 // pred_check
        %p2543 = pneg %p231
      $region66: #{tpu_custom_call.1} parent=63 // pred_check_branch
        %2545 = sbr.rel (%p2543) target = $region68
      $region67: #{tpu_custom_call.1} parent=63 // pred_region
        %s2546 = smul.u32 16, %s27
        %p2547 = scmp.lt.s32.totalorder %s26, 1
        %s2548 = scalar_select %p2547, %s26, 1
        %p2549 = scmp.lt.s32.totalorder %s2546, 31
        %s2550 = scalar_select %p2549, %s2546, 31
        %s2551 = smul.addr %s2548, 32
        %s2552 = sadd.s32 %s2550, %s2551
        %s2553 = smul.addr %s2552, 8
        %s2554 = scalar_lea.vmem %s8, %s2553
      $region68: #{tpu_custom_call.1} parent=63 // pred_fallthru
        _
    $region64: #{tpu_custom_call.1} parent=5 // pred_fallthru
      _
  $region6: #{tpu_custom_call.1} parent=0 // loop_footer
    %s19 = sadd.s32 1, %s15
  $region7: #{tpu_custom_call.1} parent=0 // loop_footer_branch
    %14 = sbr.rel target = $region3
  $region8: #{tpu_custom_call.1} parent=0 // loop_exit
    _

</llo_original>
